<compile_context>
chip_gen: v7x
topology: tpu7x:2x2x1
jax: 0.10.0
libtpu: 0.0.40
codegen_flags: <defaults>
</compile_context>

<pallas_src>
import jax
import jax.numpy as jnp
from jax import lax
from jax.experimental import pallas as pl
from jax.experimental.pallas import tpu as pltpu

_LANE = 128
_VMEM_LIMIT = 48 * 1024 * 1024   # <= v7x 64 MiB physical; raises v5e's 16 MiB default


def _round_up(x, m):
    return (x + m - 1) // m * m


# ---------------------------------------------------------------------------
# Kernel A: patch-embed matmul fused with global-average-pool partial sums.
# Emits only per-(image, row-tile) pooled sums; the feature map is not stored.
# ---------------------------------------------------------------------------
def patch_embed_pool(xp, w):
    """xp: (n, R, kin) bf16 patch tokens; w: (kin, d_pad) bf16.

    Returns un-normalized pooled sums (n, d_pad) f32 (bias added outside)."""
    n, r_real, kin = xp.shape
    d_pad = w.shape[1]

    # Row tile: big blocks are the lever on this DMA-bound kernel.
    if r_real <= 512:
        tr = _round_up(r_real, 16)        # bf16 sublane friendly
        r_pad = tr
    else:
        tr = 512
        r_pad = _round_up(r_real, tr)
    nr = r_pad // tr

    if r_pad != r_real:
        # Padded rows are zero -> contribute exactly 0 to the pooled sum.
        xp = jnp.pad(xp, ((0, 0), (0, r_pad - r_real), (0, 0)))

    def kernel(x_ref, w_ref, pool_ref):
        feat = jnp.dot(x_ref[0], w_ref[...], preferred_element_type=jnp.float32)
        s = jnp.sum(feat, axis=0, keepdims=True)            # (1, d_pad)
        # Sublane+lane dense partial block (all 8 sublanes hold the same row).
        pool_ref[0, 0] = jnp.broadcast_to(s, (8, d_pad))

    flops = 2 * n * r_pad * kin * d_pad
    bytes_accessed = int(xp.size * 2 + w.size * 2 + n * nr * 8 * d_pad * 4)

    partial = pl.pallas_call(
        kernel,
        out_shape=jax.ShapeDtypeStruct((n, nr, 8, d_pad), jnp.float32),
        grid=(n, nr),
        in_specs=[
            pl.BlockSpec((1, tr, kin), lambda bi, ri: (bi, ri, 0)),
            pl.BlockSpec((kin, d_pad), lambda bi, ri: (0, 0)),
        ],
        out_specs=pl.BlockSpec((1, 1, 8, d_pad), lambda bi, ri: (bi, ri, 0, 0)),
        compiler_params=pltpu.CompilerParams(
            dimension_semantics=("parallel", "parallel"),
            vmem_limit_bytes=_VMEM_LIMIT,
        ),
        cost_estimate=pl.CostEstimate(flops=int(flops), transcendentals=0,
                                      bytes_accessed=bytes_accessed),
    )(xp, w)

    # All 8 sublanes are identical; take sublane 0 and reduce the row tiles.
    return jnp.sum(partial[:, :, 0, :], axis=1)            # (n, d_pad) f32


# ---------------------------------------------------------------------------
# Kernel B: patch-embed of the sampled tokens fused with DRLocMLP
# (Linear-ReLU-Linear-ReLU-Linear) and the L1-loss partial sums.
# ---------------------------------------------------------------------------
def drloc_mlp_l1_loss(xs1, xs2, delta, pp):
    """xs1/xs2: (rows, kin) bf16 sampled INPUT patch tokens; delta: (rows, 2)."""
    rows, kin = xs1.shape
    out_logical = delta.shape[1]
    d_pad = pp["pe_w"].shape[1]
    hid_pad = pp["w1a"].shape[1]
    out_pad = pp["w3"].shape[1]

    tm = 128                                   # always full MXU M tiles
    rows_pad = _round_up(rows, tm)
    ntiles = rows_pad // tm
    need_row_mask = rows_pad != rows

    if need_row_mask:
        pad = ((0, rows_pad - rows), (0, 0))
        xs1 = jnp.pad(xs1, pad)
        xs2 = jnp.pad(xs2, pad)
    delta_p = jnp.zeros((rows_pad, out_pad), jnp.float32)
    delta_p = delta_p.at[:rows, :out_logical].set(delta)
    peb_p = jnp.pad(pp["pe_b"], ((0, 0), (0, d_pad - pp["pe_b"].shape[1])))

    def kernel(x1_ref, x2_ref, d_ref, pew_ref, peb_ref, w1a_ref, w1b_ref, b1_ref,
               w2_ref, b2_ref, w3_ref, b3_ref, o_ref):
        i = pl.program_id(0)
        # Fused patch-embed of the two sampled token sets (the feature map is
        # never materialized in HBM).
        f1 = jnp.dot(x1_ref[...], pew_ref[...],
                     preferred_element_type=jnp.float32) + peb_ref[...]
        f2 = jnp.dot(x2_ref[...], pew_ref[...],
                     preferred_element_type=jnp.float32) + peb_ref[...]
        # Layer 1: cat(pts1, pts2) @ W1 == pts1 @ W1a + pts2 @ W1b.
        h = jnp.dot(f1.astype(jnp.bfloat16), w1a_ref[...],
                    preferred_element_type=jnp.float32)
        h = h + jnp.dot(f2.astype(jnp.bfloat16), w1b_ref[...],
                        preferred_element_type=jnp.float32)
        h = jnp.maximum(h + b1_ref[...], 0.0)
        # Layer 2.
        h = jnp.dot(h.astype(jnp.bfloat16), w2_ref[...],
                    preferred_element_type=jnp.float32)
        h = jnp.maximum(h + b2_ref[...], 0.0)
        # Layer 3 + L1 (padded out-lanes contribute exactly zero).
        pred = jnp.dot(h.astype(jnp.bfloat16), w3_ref[...],
                       preferred_element_type=jnp.float32) + b3_ref[...]
        diff = jnp.abs(pred - d_ref[...])
        if need_row_mask:
            gid = i * tm + lax.broadcasted_iota(jnp.int32, (tm, 1), 0)
            diff = jnp.where(gid < rows, diff, 0.0)
        s = jnp.sum(diff, axis=0, keepdims=True)            # (1, out_pad)
        o_ref[0] = jnp.broadcast_to(s, (8, out_pad))        # dense partial block

    flops = 2 * rows_pad * (2 * kin * d_pad + 2 * d_pad * hid_pad
                            + hid_pad * hid_pad + hid_pad * out_pad)
    bytes_accessed = int((xs1.size + xs2.size) * 2 + delta_p.size * 4
                         + pp["pe_w"].size * 2 + peb_p.size * 4
                         + (pp["w1a"].size + pp["w1b"].size + pp["w2"].size
                            + pp["w3"].size) * 2
                         + (pp["b1"].size + pp["b2"].size + pp["b3"].size) * 4
                         + ntiles * 8 * out_pad * 4)

    partial = pl.pallas_call(
        kernel,
        out_shape=jax.ShapeDtypeStruct((ntiles, 8, out_pad), jnp.float32),
        grid=(ntiles,),
        in_specs=[
            pl.BlockSpec((tm, kin), lambda i: (i, 0)),
            pl.BlockSpec((tm, kin), lambda i: (i, 0)),
            pl.BlockSpec((tm, out_pad), lambda i: (i, 0)),
            pl.BlockSpec((kin, d_pad), lambda i: (0, 0)),
            pl.BlockSpec((1, d_pad), lambda i: (0, 0)),
            pl.BlockSpec((d_pad, hid_pad), lambda i: (0, 0)),
            pl.BlockSpec((d_pad, hid_pad), lambda i: (0, 0)),
            pl.BlockSpec((1, hid_pad), lambda i: (0, 0)),
            pl.BlockSpec((hid_pad, hid_pad), lambda i: (0, 0)),
            pl.BlockSpec((1, hid_pad), lambda i: (0, 0)),
            pl.BlockSpec((hid_pad, out_pad), lambda i: (0, 0)),
            pl.BlockSpec((1, out_pad), lambda i: (0, 0)),
        ],
        out_specs=pl.BlockSpec((1, 8, out_pad), lambda i: (i, 0, 0)),
        compiler_params=pltpu.CompilerParams(
            dimension_semantics=("parallel",),
            vmem_limit_bytes=_VMEM_LIMIT,
        ),
        cost_estimate=pl.CostEstimate(flops=int(flops), transcendentals=0,
                                      bytes_accessed=bytes_accessed),
    )(xs1, xs2, delta_p, pp["pe_w"], peb_p, pp["w1a"], pp["w1b"], pp["b1"],
      pp["w2"], pp["b2"], pp["w3"], pp["b3"])

    # nn.L1Loss(): mean over the REAL rows x 2 delta components.
    return jnp.sum(partial[:, 0, :]) / float(rows * out_logical)


# ------------------------------- parameters ---------------------------------
def init_params(key, in_chans, patch, d, hidden, out_dim=2):
    ks = jax.random.split(key, 8)
    kin = in_chans * patch * patch

    def lin(k, fan_in, shape):
        bound = 1.0 / float(fan_in) ** 0.5
        return jax.random.uniform(k, shape, jnp.float32, -bound, bound)

    return dict(
        pe_w=lin(ks[0], kin, (kin, d)),
        pe_b=lin(ks[1], kin, (1, d)),
        w1=lin(ks[2], 2 * d, (2 * d, hidden)),
        b1=lin(ks[3], 2 * d, (1, hidden)),
        w2=lin(ks[4], hidden, (hidden, hidden)),
        b2=lin(ks[5], hidden, (1, hidden)),
        w3=lin(ks[6], hidden, (hidden, out_dim)),
        b3=lin(ks[7], hidden, (1, out_dim)),
    )


def pack_params(p):
    """Zero-pad d/hidden/out dims to 128-lane multiples, split W1, cast to bf16."""
    d = p["pe_w"].shape[1]
    hidden = p["w1"].shape[1]
    out_dim = p["w3"].shape[1]
    d_pad = _round_up(d, _LANE)
    hid_pad = _round_up(hidden, _LANE)
    out_pad = _round_up(out_dim, _LANE)

    def pad2(a, rows, cols):
        return jnp.pad(a, ((0, rows - a.shape[0]), (0, cols - a.shape[1])))

    w1a, w1b = p["w1"][:d], p["w1"][d:]
    return dict(
        pe_w=pad2(p["pe_w"], p["pe_w"].shape[0], d_pad).astype(jnp.bfloat16),
        pe_b=p["pe_b"].astype(jnp.float32),     # kept logical (1, d)
        w1a=pad2(w1a, d_pad, hid_pad).astype(jnp.bfloat16),
        w1b=pad2(w1b, d_pad, hid_pad).astype(jnp.bfloat16),
        b1=pad2(p["b1"], 1, hid_pad).astype(jnp.float32),
        w2=pad2(p["w2"], hid_pad, hid_pad).astype(jnp.bfloat16),
        b2=pad2(p["b2"], 1, hid_pad).astype(jnp.float32),
        w3=pad2(p["w3"], hid_pad, out_pad).astype(jnp.bfloat16),
        b3=pad2(p["b3"], 1, out_pad).astype(jnp.float32),
    )


# ------------------------------ forward pass --------------------------------
def base_model_forward(x_nchw, m, packed, sample_key, patch=4):
    n, c_in, himg, wimg = x_nchw.shape
    hp, wp = himg // patch, wimg // patch
    k = hp                                     # square feature map (k x k)
    r = hp * wp
    d_logical = packed["pe_b"].shape[1]

    # --- x = self.base_model(x): stand-in backbone stem -----------------------
    # TODO(synk): the timm Swin transformer body is not re-implemented.
    xb = x_nchw.astype(jnp.bfloat16)           # cast BEFORE the layout shuffle
    xp = xb.reshape(n, c_in, hp, patch, wp, patch)
    xp = xp.transpose(0, 2, 4, 1, 3, 5).reshape(n, r, c_in * patch * patch)

    # --- SelectAdaptivePool2d('avg', flatten=True), fused into kernel A -------
    pool_sum = patch_embed_pool(xp, packed["pe_w"])        # (n, d_pad) f32
    pooled = pool_sum[:, :d_logical] * (1.0 / float(r)) + packed["pe_b"]

    # --- dense_relative_localization_loss -------------------------------------
    k1, k2 = jax.random.split(sample_key)
    pos_1 = jax.random.randint(k1, (n, m, 2), 0, k)        # position_sampling
    pos_2 = jax.random.randint(k2, (n, m, 2), 0, k)
    deltaxy = jnp.abs((pos_1 - pos_2).astype(jnp.float32)) / k

    # collect_samples: gather the INPUT patch tokens (O(n*m*kin) traffic); the
    # patch embed for the sampled rows is fused into kernel B.
    idx1 = pos_1[..., 0] * k + pos_1[..., 1]
    idx2 = pos_2[..., 0] * k + pos_2[..., 1]
    xs1 = jnp.take_along_axis(xp, idx1[..., None], axis=1).reshape(n * m, -1)
    xs2 = jnp.take_along_axis(xp, idx2[..., None], axis=1).reshape(n * m, -1)

    drloc_loss = drloc_mlp_l1_loss(xs1, xs2, deltaxy.reshape(n * m, 2), packed)
    return pooled, drloc_loss


# --------------------------------- main --------------------------------------
if __name__ == "__main__":
    key = jax.random.PRNGKey(0)
    pkey, xkey, skey = jax.random.split(key, 3)

    N, C_IN, IMG, PATCH = 2, 4, 16, 4          # feature map k = IMG/PATCH = 4
    D, HIDDEN, OUT = 32, 32, 2                 # DRLocMLP(2*D, HIDDEN, 2)
    M = 8                                      # samples per image

    logical = init_params(pkey, C_IN, PATCH, D, HIDDEN, OUT)
    packed = pack_params(logical)
    x = jax.random.normal(xkey, (N, C_IN, IMG, IMG), jnp.float32)

    fwd = jax.jit(base_model_forward, static_argnums=(1, 4))
    pooled, loss = fwd(x, M, packed, skey, PATCH)
    pooled, loss = jax.block_until_ready((pooled, loss))

    assert pooled.shape == (N, D) and pooled.dtype == jnp.float32
    assert loss.shape == () and loss.dtype == jnp.float32
    print("KERNEL_OK")
</pallas_src>

<mosaic_0001>
module attributes {stable_mosaic.version = 11 : i64} {
  func.func @kernel(%arg0: i32, %arg1: i32, %arg2: memref<1x16x64xbf16, #tpu.memory_space<vmem>>, %arg3: memref<64x128xbf16, #tpu.memory_space<vmem>>, %arg4: memref<1x1x8x128xf32, #tpu.memory_space<vmem>>) attributes {dimension_semantics = [#tpu.dimension_semantics<parallel>, #tpu.dimension_semantics<parallel>], iteration_bounds = array<i64: 2, 1>, scalar_prefetch = 0 : i64, scratch_operands = 0 : i64, tpu.core_type = #tpu.core_type<tc>, window_params = [{transform_indices = @transform_0, window_bounds = array<i64: 1, 16, 64>}, {pipeline_mode = #tpu.pipeline_mode<synchronous>, transform_indices = @transform_1, window_bounds = array<i64: 64, 128>}, {transform_indices = @transform_2, window_bounds = array<i64: 1, 1, 8, 128>}]} {
    %c0 = arith.constant 0 : index
    %c0_0 = arith.constant 0 : index
    %c0_1 = arith.constant 0 : index
    %0 = vector.load %arg2[%c0, %c0_0, %c0_1] : memref<1x16x64xbf16, #tpu.memory_space<vmem>>, vector<1x16x64xbf16>
    %1 = vector.shape_cast %0 : vector<1x16x64xbf16> to vector<16x64xbf16>
    %c0_2 = arith.constant 0 : index
    %c0_3 = arith.constant 0 : index
    %2 = vector.load %arg3[%c0_2, %c0_3] : memref<64x128xbf16, #tpu.memory_space<vmem>>, vector<64x128xbf16>
    %cst = arith.constant dense<0.000000e+00> : vector<16x128xf32>
    %3 = tpu.matmul %1, %2, %cst {dimension_numbers = #tpu.dot_dimension_numbers<[1], [0], [0], [1], [0, 0, 1, 1], [], []>} : vector<16x64xbf16>, vector<64x128xbf16>, vector<16x128xf32> -> vector<16x128xf32>
    %cst_4 = arith.constant dense<0.000000e+00> : vector<128xf32>
    %4 = vector.multi_reduction <add>, %3, %cst_4 [0] : vector<16x128xf32> to vector<128xf32>
    %5 = vector.shape_cast %4 : vector<128xf32> to vector<1x128xf32>
    %6 = vector.shape_cast %5 : vector<1x128xf32> to vector<1x128xf32>
    %7 = vector.broadcast %6 : vector<1x128xf32> to vector<8x128xf32>
    %c0_5 = arith.constant 0 : index
    %c0_6 = arith.constant 0 : index
    %c0_7 = arith.constant 0 : index
    %c0_8 = arith.constant 0 : index
    %8 = vector.load %arg4[%c0_5, %c0_6, %c0_7, %c0_8] : memref<1x1x8x128xf32, #tpu.memory_space<vmem>>, vector<1x1x8x128xf32>
    %9 = vector.shape_cast %8 : vector<1x1x8x128xf32> to vector<8x128xf32>
    %10 = vector.shape_cast %7 : vector<8x128xf32> to vector<1x1x8x128xf32>
    tpu.vector_store %arg4[%c0_5, %c0_6, %c0_7, %c0_8], %10 {strides = array<i32>} : memref<1x1x8x128xf32, #tpu.memory_space<vmem>>, vector<1x1x8x128xf32>,
    return
  }
  func.func @transform_0(%arg0: i32, %arg1: i32) -> (i32, i32, i32) {
    %c0_i32 = arith.constant 0 : i32
    %c0_i32_0 = arith.constant 0 : i32
    return %arg0, %arg1, %c0_i32 : i32, i32, i32
  }
  func.func @transform_1(%arg0: i32, %arg1: i32) -> (i32, i32) {
    %c0_i32 = arith.constant 0 : i32
    %c0_i32_0 = arith.constant 0 : i32
    %c0_i32_1 = arith.constant 0 : i32
    return %c0_i32, %c0_i32_0 : i32, i32
  }
  func.func @transform_2(%arg0: i32, %arg1: i32) -> (i32, i32, i32, i32) {
    %c0_i32 = arith.constant 0 : i32
    %c0_i32_0 = arith.constant 0 : i32
    %c0_i32_1 = arith.constant 0 : i32
    return %arg0, %arg1, %c0_i32, %c0_i32_0 : i32, i32, i32, i32
  }
}

module attributes {stable_mosaic.version = 11 : i64} {
  func.func @kernel(%arg0: i32, %arg1: memref<128x64xbf16, #tpu.memory_space<vmem>>, %arg2: memref<128x64xbf16, #tpu.memory_space<vmem>>, %arg3: memref<128x128xf32, #tpu.memory_space<vmem>>, %arg4: memref<64x128xbf16, #tpu.memory_space<vmem>>, %arg5: memref<1x128xf32, #tpu.memory_space<vmem>>, %arg6: memref<128x128xbf16, #tpu.memory_space<vmem>>, %arg7: memref<128x128xbf16, #tpu.memory_space<vmem>>, %arg8: memref<1x128xf32, #tpu.memory_space<vmem>>, %arg9: memref<128x128xbf16, #tpu.memory_space<vmem>>, %arg10: memref<1x128xf32, #tpu.memory_space<vmem>>, %arg11: memref<128x128xbf16, #tpu.memory_space<vmem>>, %arg12: memref<1x128xf32, #tpu.memory_space<vmem>>, %arg13: memref<1x8x128xf32, #tpu.memory_space<vmem>>) attributes {dimension_semantics = [#tpu.dimension_semantics<parallel>], iteration_bounds = array<i64: 1>, scalar_prefetch = 0 : i64, scratch_operands = 0 : i64, tpu.core_type = #tpu.core_type<tc>, window_params = [{transform_indices = @transform_0, window_bounds = array<i64: 128, 64>}, {transform_indices = @transform_1, window_bounds = array<i64: 128, 64>}, {transform_indices = @transform_2, window_bounds = array<i64: 128, 128>}, {pipeline_mode = #tpu.pipeline_mode<synchronous>, transform_indices = @transform_3, window_bounds = array<i64: 64, 128>}, {pipeline_mode = #tpu.pipeline_mode<synchronous>, transform_indices = @transform_4, window_bounds = array<i64: 1, 128>}, {pipeline_mode = #tpu.pipeline_mode<synchronous>, transform_indices = @transform_5, window_bounds = array<i64: 128, 128>}, {pipeline_mode = #tpu.pipeline_mode<synchronous>, transform_indices = @transform_6, window_bounds = array<i64: 128, 128>}, {pipeline_mode = #tpu.pipeline_mode<synchronous>, transform_indices = @transform_7, window_bounds = array<i64: 1, 128>}, {pipeline_mode = #tpu.pipeline_mode<synchronous>, transform_indices = @transform_8, window_bounds = array<i64: 128, 128>}, {pipeline_mode = #tpu.pipeline_mode<synchronous>, transform_indices = @transform_9, window_bounds = array<i64: 1, 128>}, {pipeline_mode = #tpu.pipeline_mode<synchronous>, transform_indices = @transform_10, window_bounds = array<i64: 128, 128>}, {pipeline_mode = #tpu.pipeline_mode<synchronous>, transform_indices = @transform_11, window_bounds = array<i64: 1, 128>}, {transform_indices = @transform_12, window_bounds = array<i64: 1, 8, 128>}]} {
    %c0 = arith.constant 0 : index
    %c0_0 = arith.constant 0 : index
    %0 = vector.load %arg1[%c0, %c0_0] : memref<128x64xbf16, #tpu.memory_space<vmem>>, vector<128x64xbf16>
    %c0_1 = arith.constant 0 : index
    %c0_2 = arith.constant 0 : index
    %1 = vector.load %arg4[%c0_1, %c0_2] : memref<64x128xbf16, #tpu.memory_space<vmem>>, vector<64x128xbf16>
    %cst = arith.constant dense<0.000000e+00> : vector<128x128xf32>
    %2 = tpu.matmul %0, %1, %cst {dimension_numbers = #tpu.dot_dimension_numbers<[1], [0], [0], [1], [0, 0, 1, 1], [], []>} : vector<128x64xbf16>, vector<64x128xbf16>, vector<128x128xf32> -> vector<128x128xf32>
    %c0_3 = arith.constant 0 : index
    %c0_4 = arith.constant 0 : index
    %3 = vector.load %arg5[%c0_3, %c0_4] : memref<1x128xf32, #tpu.memory_space<vmem>>, vector<1x128xf32>
    %4 = vector.broadcast %3 : vector<1x128xf32> to vector<128x128xf32>
    %5 = arith.addf %2, %4 : vector<128x128xf32>
    %c0_5 = arith.constant 0 : index
    %c0_6 = arith.constant 0 : index
    %6 = vector.load %arg2[%c0_5, %c0_6] : memref<128x64xbf16, #tpu.memory_space<vmem>>, vector<128x64xbf16>
    %c0_7 = arith.constant 0 : index
    %c0_8 = arith.constant 0 : index
    %7 = vector.load %arg4[%c0_7, %c0_8] : memref<64x128xbf16, #tpu.memory_space<vmem>>, vector<64x128xbf16>
    %cst_9 = arith.constant dense<0.000000e+00> : vector<128x128xf32>
    %8 = tpu.matmul %6, %7, %cst_9 {dimension_numbers = #tpu.dot_dimension_numbers<[1], [0], [0], [1], [0, 0, 1, 1], [], []>} : vector<128x64xbf16>, vector<64x128xbf16>, vector<128x128xf32> -> vector<128x128xf32>
    %c0_10 = arith.constant 0 : index
    %c0_11 = arith.constant 0 : index
    %9 = vector.load %arg5[%c0_10, %c0_11] : memref<1x128xf32, #tpu.memory_space<vmem>>, vector<1x128xf32>
    %10 = vector.broadcast %9 : vector<1x128xf32> to vector<128x128xf32>
    %11 = arith.addf %8, %10 : vector<128x128xf32>
    %12 = arith.truncf %5 : vector<128x128xf32> to vector<128x128xbf16>
    %c0_12 = arith.constant 0 : index
    %c0_13 = arith.constant 0 : index
    %13 = vector.load %arg6[%c0_12, %c0_13] : memref<128x128xbf16, #tpu.memory_space<vmem>>, vector<128x128xbf16>
    %cst_14 = arith.constant dense<0.000000e+00> : vector<128x128xf32>
    %14 = tpu.matmul %12, %13, %cst_14 {dimension_numbers = #tpu.dot_dimension_numbers<[1], [0], [0], [1], [0, 0, 1, 1], [], []>} : vector<128x128xbf16>, vector<128x128xbf16>, vector<128x128xf32> -> vector<128x128xf32>
    %15 = arith.truncf %11 : vector<128x128xf32> to vector<128x128xbf16>
    %c0_15 = arith.constant 0 : index
    %c0_16 = arith.constant 0 : index
    %16 = vector.load %arg7[%c0_15, %c0_16] : memref<128x128xbf16, #tpu.memory_space<vmem>>, vector<128x128xbf16>
    %cst_17 = arith.constant dense<0.000000e+00> : vector<128x128xf32>
    %17 = tpu.matmul %15, %16, %cst_17 {dimension_numbers = #tpu.dot_dimension_numbers<[1], [0], [0], [1], [0, 0, 1, 1], [], []>} : vector<128x128xbf16>, vector<128x128xbf16>, vector<128x128xf32> -> vector<128x128xf32>
    %18 = arith.addf %14, %17 : vector<128x128xf32>
    %c0_18 = arith.constant 0 : index
    %c0_19 = arith.constant 0 : index
    %19 = vector.load %arg8[%c0_18, %c0_19] : memref<1x128xf32, #tpu.memory_space<vmem>>, vector<1x128xf32>
    %20 = vector.broadcast %19 : vector<1x128xf32> to vector<128x128xf32>
    %21 = arith.addf %18, %20 : vector<128x128xf32>
    %cst_20 = arith.constant 0.000000e+00 : f32
    %22 = vector.broadcast %cst_20 : f32 to vector<128x128xf32>
    %23 = arith.maximumf %21, %22 : vector<128x128xf32>
    %24 = arith.truncf %23 : vector<128x128xf32> to vector<128x128xbf16>
    %c0_21 = arith.constant 0 : index
    %c0_22 = arith.constant 0 : index
    %25 = vector.load %arg9[%c0_21, %c0_22] : memref<128x128xbf16, #tpu.memory_space<vmem>>, vector<128x128xbf16>
    %cst_23 = arith.constant dense<0.000000e+00> : vector<128x128xf32>
    %26 = tpu.matmul %24, %25, %cst_23 {dimension_numbers = #tpu.dot_dimension_numbers<[1], [0], [0], [1], [0, 0, 1, 1], [], []>} : vector<128x128xbf16>, vector<128x128xbf16>, vector<128x128xf32> -> vector<128x128xf32>
    %c0_24 = arith.constant 0 : index
    %c0_25 = arith.constant 0 : index
    %27 = vector.load %arg10[%c0_24, %c0_25] : memref<1x128xf32, #tpu.memory_space<vmem>>, vector<1x128xf32>
    %28 = vector.broadcast %27 : vector<1x128xf32> to vector<128x128xf32>
    %29 = arith.addf %26, %28 : vector<128x128xf32>
    %cst_26 = arith.constant 0.000000e+00 : f32
    %30 = vector.broadcast %cst_26 : f32 to vector<128x128xf32>
    %31 = arith.maximumf %29, %30 : vector<128x128xf32>
    %32 = arith.truncf %31 : vector<128x128xf32> to vector<128x128xbf16>
    %c0_27 = arith.constant 0 : index
    %c0_28 = arith.constant 0 : index
    %33 = vector.load %arg11[%c0_27, %c0_28] : memref<128x128xbf16, #tpu.memory_space<vmem>>, vector<128x128xbf16>
    %cst_29 = arith.constant dense<0.000000e+00> : vector<128x128xf32>
    %34 = tpu.matmul %32, %33, %cst_29 {dimension_numbers = #tpu.dot_dimension_numbers<[1], [0], [0], [1], [0, 0, 1, 1], [], []>} : vector<128x128xbf16>, vector<128x128xbf16>, vector<128x128xf32> -> vector<128x128xf32>
    %c0_30 = arith.constant 0 : index
    %c0_31 = arith.constant 0 : index
    %35 = vector.load %arg12[%c0_30, %c0_31] : memref<1x128xf32, #tpu.memory_space<vmem>>, vector<1x128xf32>
    %36 = vector.broadcast %35 : vector<1x128xf32> to vector<128x128xf32>
    %37 = arith.addf %34, %36 : vector<128x128xf32>
    %c0_32 = arith.constant 0 : index
    %c0_33 = arith.constant 0 : index
    %38 = vector.load %arg3[%c0_32, %c0_33] : memref<128x128xf32, #tpu.memory_space<vmem>>, vector<128x128xf32>
    %39 = arith.subf %37, %38 : vector<128x128xf32>
    %40 = math.absf %39 : vector<128x128xf32>
    %c128_i32 = arith.constant 128 : i32
    %41 = arith.muli %arg0, %c128_i32 : i32
    %42 = tpu.iota {dimensions = array<i32: 0>} : vector<128x1xi32>
    %43 = vector.broadcast %41 : i32 to vector<128x1xi32>
    %44 = arith.addi %43, %42 : vector<128x1xi32>
    %c16_i32 = arith.constant 16 : i32
    %45 = vector.broadcast %c16_i32 : i32 to vector<128x1xi32>
    %46 = arith.cmpi slt, %44, %45 : vector<128x1xi32>
    %cst_34 = arith.constant 0.000000e+00 : f32
    %47 = vector.shape_cast %46 : vector<128x1xi1> to vector<128x1xi1>
    %48 = vector.broadcast %47 : vector<128x1xi1> to vector<128x128xi1>
    %49 = vector.broadcast %cst_34 : f32 to vector<128x128xf32>
    %50 = arith.select %48, %40, %49 : vector<128x128xi1>, vector<128x128xf32>
    %cst_35 = arith.constant dense<0.000000e+00> : vector<128xf32>
    %51 = vector.multi_reduction <add>, %50, %cst_35 [0] : vector<128x128xf32> to vector<128xf32>
    %52 = vector.shape_cast %51 : vector<128xf32> to vector<1x128xf32>
    %53 = vector.shape_cast %52 : vector<1x128xf32> to vector<1x128xf32>
    %54 = vector.broadcast %53 : vector<1x128xf32> to vector<8x128xf32>
    %c0_36 = arith.constant 0 : index
    %c0_37 = arith.constant 0 : index
    %c0_38 = arith.constant 0 : index
    %55 = vector.load %arg13[%c0_36, %c0_37, %c0_38] : memref<1x8x128xf32, #tpu.memory_space<vmem>>, vector<1x8x128xf32>
    %56 = vector.shape_cast %55 : vector<1x8x128xf32> to vector<8x128xf32>
    %57 = vector.shape_cast %54 : vector<8x128xf32> to vector<1x8x128xf32>
    tpu.vector_store %arg13[%c0_36, %c0_37, %c0_38], %57 {strides = array<i32>} : memref<1x8x128xf32, #tpu.memory_space<vmem>>, vector<1x8x128xf32>,
    return
  }
  func.func @transform_0(%arg0: i32) -> (i32, i32) {
    %c0_i32 = arith.constant 0 : i32
    %c0_i32_0 = arith.constant 0 : i32
    return %arg0, %c0_i32 : i32, i32
  }
  func.func @transform_1(%arg0: i32) -> (i32, i32) {
    %c0_i32 = arith.constant 0 : i32
    %c0_i32_0 = arith.constant 0 : i32
    return %arg0, %c0_i32 : i32, i32
  }
  func.func @transform_2(%arg0: i32) -> (i32, i32) {
    %c0_i32 = arith.constant 0 : i32
    %c0_i32_0 = arith.constant 0 : i32
    return %arg0, %c0_i32 : i32, i32
  }
  func.func @transform_3(%arg0: i32) -> (i32, i32) {
    %c0_i32 = arith.constant 0 : i32
    %c0_i32_0 = arith.constant 0 : i32
    %c0_i32_1 = arith.constant 0 : i32
    return %c0_i32, %c0_i32_0 : i32, i32
  }
  func.func @transform_4(%arg0: i32) -> (i32, i32) {
    %c0_i32 = arith.constant 0 : i32
    %c0_i32_0 = arith.constant 0 : i32
    %c0_i32_1 = arith.constant 0 : i32
    return %c0_i32, %c0_i32_0 : i32, i32
  }
  func.func @transform_5(%arg0: i32) -> (i32, i32) {
    %c0_i32 = arith.constant 0 : i32
    %c0_i32_0 = arith.constant 0 : i32
    %c0_i32_1 = arith.constant 0 : i32
    return %c0_i32, %c0_i32_0 : i32, i32
  }
  func.func @transform_6(%arg0: i32) -> (i32, i32) {
    %c0_i32 = arith.constant 0 : i32
    %c0_i32_0 = arith.constant 0 : i32
    %c0_i32_1 = arith.constant 0 : i32
    return %c0_i32, %c0_i32_0 : i32, i32
  }
  func.func @transform_7(%arg0: i32) -> (i32, i32) {
    %c0_i32 = arith.constant 0 : i32
    %c0_i32_0 = arith.constant 0 : i32
    %c0_i32_1 = arith.constant 0 : i32
    return %c0_i32, %c0_i32_0 : i32, i32
  }
  func.func @transform_8(%arg0: i32) -> (i32, i32) {
    %c0_i32 = arith.constant 0 : i32
    %c0_i32_0 = arith.constant 0 : i32
    %c0_i32_1 = arith.constant 0 : i32
    return %c0_i32, %c0_i32_0 : i32, i32
  }
  func.func @transform_9(%arg0: i32) -> (i32, i32) {
    %c0_i32 = arith.constant 0 : i32
    %c0_i32_0 = arith.constant 0 : i32
    %c0_i32_1 = arith.constant 0 : i32
    return %c0_i32, %c0_i32_0 : i32, i32
  }
  func.func @transform_10(%arg0: i32) -> (i32, i32) {
    %c0_i32 = arith.constant 0 : i32
    %c0_i32_0 = arith.constant 0 : i32
    %c0_i32_1 = arith.constant 0 : i32
    return %c0_i32, %c0_i32_0 : i32, i32
  }
  func.func @transform_11(%arg0: i32) -> (i32, i32) {
    %c0_i32 = arith.constant 0 : i32
    %c0_i32_0 = arith.constant 0 : i32
    %c0_i32_1 = arith.constant 0 : i32
    return %c0_i32, %c0_i32_0 : i32, i32
  }
  func.func @transform_12(%arg0: i32) -> (i32, i32, i32) {
    %c0_i32 = arith.constant 0 : i32
    %c0_i32_0 = arith.constant 0 : i32
    %c0_i32_1 = arith.constant 0 : i32
    return %arg0, %c0_i32, %c0_i32_0 : i32, i32, i32
  }
}

</mosaic_0001>

<llo_original>
// kernel: base_model_forward.2
$region0: #{base_model_forward.2}
  #allocation0 [shape = 'u32[]', space=smem, size = 0x4, offset = 0x4, fixed_abs, tag = 'smem constant byte address 0x4 - core index']
  #allocation1 [shape = 'u32[144,128]{1,0:T(1,128)}', space=vmem, size = 0x12000, scoped, tag = 'internal scratch']
  %s0 = inlined_call_operand.vmem [shape: bf16[2,16,64], index: 0, kind: input, shape index: {}]
  %s1 = inlined_call_operand.vmem [shape: bf16[64,128], index: 1, kind: input, shape index: {}]
  %s2 = inlined_call_operand.vmem [shape: f32[2,1,8,128], index: 2, kind: output, shape index: {}]
  %s3 = sld [smem:[#allocation0]]
  $region41: #{base_model_forward.2} parent=0
    _
  %s5 = ssub.s32 1, %s3
  %s6 = scalar_select 0, %s5, %s3
  loop: start=0, step=1, limit=4
  $region2: #{base_model_forward.2} parent=0 // loop_pre_header
    _
  $region3: #{base_model_forward.2} parent=0 // loop_header
    %s8 = sphi 0, %s12
    %p9 = scmp.ge.s32.totalorder %s8, 4
    %s15 = sphi 0, %s27
    %s16 = sphi 0, %s23
    %s17 = sphi 0, %s15
    %s18 = sphi 0, %s16
    %s19 = sphi 0, %s17
    %s20 = sphi 0, %s18
    %s32 = sphi 0, %s34
    %s35 = sphi 0, %s32
    %s36 = sphi 0, %s35
    %s52 = sphi 0, %s36
    %s56 = sphi 0, %s56
    %s58 = sphi 0, %s56
    %s59 = sphi 0, %s58
    %s73 = sphi 0, %s59
    %s81 = sphi 0, %s83
    %s84 = sphi 0, %s81
    %s85 = sphi 0, %s84
    %s101 = sphi 0, %s85
  $region4: #{base_model_forward.2} parent=0 // loop_header_branch
    %11 = sbr.rel (%p9) target = $region8
  $region5: #{base_model_forward.2} parent=0 // loop_body
    %s13 = ssub.s32 %s8, 1
    %s14 = ssub.s32 %s8, 2
    %s21 = sadd.s32 1, %s16
    %p22 = scmp.ge.s32.totalorder %s21, 1
    %s23 = scalar_select %p22, 0, %s21
    %s24 = sadd.s32 1, %s15
    %s25 = scalar_select %p22, %s24, %s15
    %p26 = scmp.ge.s32.totalorder %s25, 2
    %s27 = scalar_select %p26, 0, %s25
    %s28 = ssub.s32 %s15, %s27
    %s29 = ssub.s32 %s16, %s23
    %s30 = sor.u32 %s28, %s29
    %p31 = scmp.eq.s32.totalorder %s30, 0
    %s33 = sadd.s32 %s32, 1
    %s34 = scalar_select %p31, %s32, %s33
    %p37 = pneg %p31
    %p38 = scmp.eq.s32.totalorder %s8, 1
    %p39 = por %p37, %p38
    %p40 = scmp.ne.s32.totalorder %s32, %s35
    %p41 = scmp.eq.s32.totalorder %s8, 0
    %p42 = por %p40, %p41
    %p43 = scmp.ne.s32.totalorder %s32, %s35
    %p44 = scmp.eq.s32.totalorder %s13, 1
    %p45 = por %p43, %p44
    %p46 = scmp.ne.s32.totalorder %s35, %s36
    %p47 = scmp.eq.s32.totalorder %s13, 0
    %p48 = por %p46, %p47
    %p49 = scmp.ne.s32.totalorder %s35, %s36
    %p50 = scmp.eq.s32.totalorder %s14, 1
    %p51 = por %p49, %p50
    %p53 = scmp.ne.s32.totalorder %s36, %s52
    %p54 = scmp.eq.s32.totalorder %s14, 0
    %p55 = por %p53, %p54
    %s57 = sadd.s32 %s56, 1
    %p60 = scmp.eq.s32.totalorder %s8, 1
    %p61 = scmp.ne.s32.totalorder %s56, %s58
    %p62 = scmp.eq.s32.totalorder %s8, 0
    %p63 = por %p61, %p62
    %p64 = scmp.ne.s32.totalorder %s56, %s58
    %p65 = scmp.eq.s32.totalorder %s13, 1
    %p66 = por %p64, %p65
    %p67 = scmp.ne.s32.totalorder %s58, %s59
    %p68 = scmp.eq.s32.totalorder %s13, 0
    %p69 = por %p67, %p68
    %p70 = scmp.ne.s32.totalorder %s58, %s59
    %p71 = scmp.eq.s32.totalorder %s14, 1
    %p72 = por %p70, %p71
    %p74 = scmp.ne.s32.totalorder %s59, %s73
    %p75 = scmp.eq.s32.totalorder %s14, 0
    %p76 = por %p74, %p75
    %s77 = ssub.s32 %s15, %s27
    %s78 = ssub.s32 %s16, %s23
    %s79 = sor.u32 %s77, %s78
    %p80 = scmp.eq.s32.totalorder %s79, 0
    %s82 = sadd.s32 %s81, 1
    %s83 = scalar_select %p80, %s81, %s82
    %p86 = pneg %p80
    %p87 = scmp.eq.s32.totalorder %s8, 1
    %p88 = por %p86, %p87
    %p89 = scmp.ne.s32.totalorder %s81, %s84
    %p90 = scmp.eq.s32.totalorder %s8, 0
    %p91 = por %p89, %p90
    %p92 = scmp.ne.s32.totalorder %s81, %s84
    %p93 = scmp.eq.s32.totalorder %s13, 1
    %p94 = por %p92, %p93
    %p95 = scmp.ne.s32.totalorder %s84, %s85
    %p96 = scmp.eq.s32.totalorder %s13, 0
    %p97 = por %p95, %p96
    %p98 = scmp.ne.s32.totalorder %s84, %s85
    %p99 = scmp.eq.s32.totalorder %s14, 1
    %p100 = por %p98, %p99
    %p102 = scmp.ne.s32.totalorder %s85, %s101
    %p103 = scmp.eq.s32.totalorder %s14, 0
    %p104 = por %p102, %p103
    %p105 = scmp.le.s32.totalorder 1, %s8
    %p106 = scmp.lt.s32.totalorder %s8, 3
    %p107 = pnand %p105, %p106
    %p108 = pneg %p107
    // Predicated region
    $region9: #{base_model_forward.2} parent=5 // pred_check
      _
    $region10: #{base_model_forward.2} parent=5 // pred_check_branch
      %110 = sbr.rel (%p107) target = $region12
    $region11: #{base_model_forward.2} parent=5 // pred_region
      %s111 = ssub.s32 %s8, 1
      // Predicated region
      $region13: #{base_model_forward.2} parent=11 // pred_check
        %p112 = pneg %p69
      $region14: #{base_model_forward.2} parent=11 // pred_check_branch
        %114 = sbr.rel (%p112) target = $region16
      $region15: #{base_model_forward.2} parent=11 // pred_region
        _
      $region16: #{base_model_forward.2} parent=11 // pred_fallthru
        _
    $region12: #{base_model_forward.2} parent=5 // pred_fallthru
      _
    %p115 = scmp.lt.s32.totalorder %s8, 2
    // Predicated region
    $region17: #{base_model_forward.2} parent=5 // pred_check
      %p116 = pneg %p115
    $region18: #{base_model_forward.2} parent=5 // pred_check_branch
      %118 = sbr.rel (%p116) target = $region20
    $region19: #{base_model_forward.2} parent=5 // pred_region
      // Predicated region
      $region21: #{base_model_forward.2} parent=19 // pred_check
        %p119 = pneg %p42
      $region22: #{base_model_forward.2} parent=19 // pred_check_branch
        %121 = sbr.rel (%p119) target = $region24
      $region23: #{base_model_forward.2} parent=19 // pred_region
        %s122 = smul.u32 2, %s16
        %p123 = scmp.lt.s32.totalorder %s15, 1
        %s124 = scalar_select %p123, %s15, 1
        %p125 = scmp.lt.s32.totalorder %s122, 1
        %s126 = scalar_select %p125, %s122, 1
        %s127 = smul.addr %s124, 2
        %s128 = sadd.s32 %s126, %s127
        %s129 = smul.addr %s128, 4
        %s130 = scalar_lea.vmem %s0, %s129
        %s131 = smul.u32 2, %s16
      $region24: #{base_model_forward.2} parent=19 // pred_fallthru
        _
    $region20: #{base_model_forward.2} parent=5 // pred_fallthru
      _
    %p132 = scmp.le.s32.totalorder 1, %s8
    %p133 = scmp.lt.s32.totalorder %s8, 3
    %p134 = pnand %p132, %p133
    %p135 = pneg %p134
    // Predicated region
    $region25: #{base_model_forward.2} parent=5 // pred_check
      _
    $region26: #{base_model_forward.2} parent=5 // pred_check_branch
      %137 = sbr.rel (%p134) target = $region28
    $region27: #{base_model_forward.2} parent=5 // pred_region
      %s138 = ssub.s32 %s8, 1
      %s139 = smul.u32 2, %s18
      %p140 = scmp.lt.s32.totalorder %s17, 1
      %s141 = scalar_select %p140, %s17, 1
      %p142 = scmp.lt.s32.totalorder %s139, 1
      %s143 = scalar_select %p142, %s139, 1
      %s144 = smul.addr %s141, 2
      %s145 = sadd.s32 %s143, %s144
      %s146 = smul.addr %s145, 4
      %s147 = scalar_lea.vmem %s0, %s146
      %p148 = pneg %p48
      %p149 = pneg %p45
      %p150 = pneg %p69
      %p151 = pneg %p66
      %p152 = pneg %p97
      %p153 = pneg %p94
      %p154 = scmp.lt.s32.totalorder %s17, 1
      %s155 = scalar_select %p154, %s17, 1
      %p156 = scmp.lt.s32.totalorder %s18, 0
      %s157 = scalar_select %p156, %s18, 0
      %s158 = sadd.s32 %s157, %s155
      %s159 = smul.addr %s158, 8
      %s160 = scalar_lea.vmem %s2, %s159
      %s161 = smul.u32 2, %s18
      %p162 = scmp.lt.s32.totalorder %s17, 1
      %s163 = scalar_select %p162, %s17, 1
      %p164 = scmp.lt.s32.totalorder %s161, 1
      %s165 = scalar_select %p164, %s161, 1
      %s166 = smul.addr %s163, 2
      %s167 = sadd.s32 %s165, %s166
      %s168 = smul.addr %s167, 4
      %s169 = scalar_lea.vmem %s0, %s168
      %s170 = smul.u32 2, %s18
      %p171 = scmp.lt.s32.totalorder %s17, 1
      %s172 = scalar_select %p171, %s17, 1
      %p173 = scmp.lt.s32.totalorder %s18, 0
      %s174 = scalar_select %p173, %s18, 0
      %s175 = sadd.s32 %s174, %s172
      %s176 = smul.addr %s175, 8
      %s177 = scalar_lea.vmem %s2, %s176
      %v179 = vld [vmem:[%s169] sm:$0xf]
      %v180 = vld [vmem:[%s169 + $0x4] sm:$0xf]
      %v181 = vld [vmem:[%s1] sm:$0xf]
      %v182 = vld [vmem:[%s1 + $0x4] sm:$0xf]
      %v183 = vld [vmem:[%s1 + $0x8] sm:$0xf]
      %v184 = vld [vmem:[%s1 + $0xc] sm:$0xf]
      %v185 = vld [vmem:[%s1 + $0x10] sm:$0xf]
      %v186 = vld [vmem:[%s1 + $0x14] sm:$0xf]
      %v187 = vld [vmem:[%s1 + $0x18] sm:$0xf]
      %v188 = vld [vmem:[%s1 + $0x1c] sm:$0xf]
      %v191 = vunpack.c.l.b16 %v179
      %v192 = vunpack.c.l.b16 %v180
      %v193 = vpack.c.b16 %v192, %v191
      %v202 = vunpack.c.l.b16 %v181
      %v203 = vunpack.c.l.b16 %v182
      %v204 = vunpack.c.l.b16 %v183
      %v205 = vunpack.c.l.b16 %v184
      %v206 = vunpack.c.l.b16 %v185
      %v207 = vunpack.c.l.b16 %v186
      %v208 = vunpack.c.l.b16 %v187
      %v209 = vunpack.c.l.b16 %v188
      %v210 = vpack.c.b16 %v203, %v202
      %v211 = vpack.c.b16 %v205, %v204
      %v212 = vpack.c.b16 %v207, %v206
      %v213 = vpack.c.b16 %v209, %v208
      %vm218 = vcmask 523264
      %v220 = vsel %vm218, %v193, 0
      %222 = vmatprep.subr.bf16.mxu0 0
      %223 = vmatpush1.bf16.msra.mxu0 %v210
      %224 = vmatprep.subr.bf16.mxu0 0
      %225 = vmatpush1.bf16.msra.mxu0 %v211
      %226 = vmatprep.subr.bf16.mxu0 0
      %227 = vmatpush1.bf16.msra.mxu0 %v212
      %228 = vmatprep.subr.bf16.mxu0 0
      %229 = vmatpush1.bf16.msra.mxu0 %v213
      %230 = vmatprep.subr.bf16.mxu0 0
      %231 = vmatpush1.bf16.msra.mxu0 0
      %232 = vmatprep.subr.bf16.mxu0 0
      %233 = vmatpush1.bf16.msra.mxu0 0
      %234 = vmatprep.subr.bf16.mxu0 0
      %235 = vmatpush1.bf16.msra.mxu0 0
      %236 = vmatprep.subr.bf16.mxu0 0
      %237 = vmatpush1.bf16.msra.mxu0 0
      %238 = vmatprep.subr.bf16.mxu0 0
      %239 = vmatpush1.bf16.msra.mxu0 0
      %240 = vmatprep.subr.bf16.mxu0 0
      %241 = vmatpush1.bf16.msra.mxu0 0
      %242 = vmatprep.subr.bf16.mxu0 0
      %243 = vmatpush1.bf16.msra.mxu0 0
      %244 = vmatprep.subr.bf16.mxu0 0
      %245 = vmatpush1.bf16.msra.mxu0 0
      %246 = vmatprep.subr.bf16.mxu0 0
      %247 = vmatpush1.bf16.msra.mxu0 0
      %248 = vmatprep.subr.bf16.mxu0 0
      %249 = vmatpush1.bf16.msra.mxu0 0
      %250 = vmatprep.subr.bf16.mxu0 0
      %251 = vmatpush1.bf16.msra.mxu0 0
      %252 = vmatprep.subr.bf16.mxu0 0
      %253 = vmatpush1.bf16.msra.mxu0 0
      %254 = vmatprep.mubr.bf16.mxu0 0
      %255 = vmatmul.mubr.bf16.gmra.mrb[0].mxu0 %v220
      %v256 = vpop.f32.mrb[0].mxu0
      %v257 = vadd.f32 0.0, %v256
      %v258 = vpop.f32.mrb[0].mxu0
      %v259 = vpop.f32.mrb[0].mxu0
      %v260 = vadd.f32 0.0, %v259
      %v261 = vpop.f32.mrb[0].mxu0
      %262 = vdwg.mxu0
      %v263 = vadd.f32 %v257, %v260
      %v264 = vrot.slane %v263, 4
      %v265 = vadd.f32 %v263, %v264
      %v266 = vrot.slane %v265, 2
      %v267 = vadd.f32 %v265, %v266
      %v268 = vrot.slane %v267, 1
      %v269 = vadd.f32 %v267, %v268
      %270 = vst [vmem:[%s177] sm:$0xff] %v269
      %p271 = scmp.lt.s32.totalorder %s17, 1
      %s272 = scalar_select %p271, %s17, 1
      %p273 = scmp.lt.s32.totalorder %s18, 0
      %s274 = scalar_select %p273, %s18, 0
      %s275 = sadd.s32 %s274, %s272
      %s276 = smul.addr %s275, 8
      %s277 = scalar_lea.vmem %s2, %s276
      // Predicated region
      $region29: #{base_model_forward.2} parent=27 // pred_check
        %p278 = pneg %p94
      $region30: #{base_model_forward.2} parent=27 // pred_check_branch
        %280 = sbr.rel (%p278) target = $region32
      $region31: #{base_model_forward.2} parent=27 // pred_region
        _
      $region32: #{base_model_forward.2} parent=27 // pred_fallthru
        _
    $region28: #{base_model_forward.2} parent=5 // pred_fallthru
      _
    %p281 = scmp.le.s32.totalorder 2, %s8
    // Predicated region
    $region33: #{base_model_forward.2} parent=5 // pred_check
      %p282 = pneg %p281
    $region34: #{base_model_forward.2} parent=5 // pred_check_branch
      %284 = sbr.rel (%p282) target = $region36
    $region35: #{base_model_forward.2} parent=5 // pred_region
      %s285 = ssub.s32 %s8, 2
      // Predicated region
      $region37: #{base_model_forward.2} parent=35 // pred_check
        %p286 = pneg %p100
      $region38: #{base_model_forward.2} parent=35 // pred_check_branch
        %288 = sbr.rel (%p286) target = $region40
      $region39: #{base_model_forward.2} parent=35 // pred_region
        %p289 = scmp.lt.s32.totalorder %s19, 1
        %s290 = scalar_select %p289, %s19, 1
        %p291 = scmp.lt.s32.totalorder %s20, 0
        %s292 = scalar_select %p291, %s20, 0
        %s293 = sadd.s32 %s292, %s290
        %s294 = smul.addr %s293, 8
        %s295 = scalar_lea.vmem %s2, %s294
      $region40: #{base_model_forward.2} parent=35 // pred_fallthru
        _
    $region36: #{base_model_forward.2} parent=5 // pred_fallthru
      _
  $region6: #{base_model_forward.2} parent=0 // loop_footer
    %s12 = sadd.s32 1, %s8
  $region7: #{base_model_forward.2} parent=0 // loop_footer_branch
    %7 = sbr.rel target = $region3
  $region8: #{base_model_forward.2} parent=0 // loop_exit
    _

// kernel: base_model_forward.3
$region0: #{base_model_forward.3}
  #allocation0 [shape = 'u32[]', space=smem, size = 0x4, offset = 0x4, fixed_abs, tag = 'smem constant byte address 0x4 - core index']
  #allocation1 [shape = 'u32[144,128]{1,0:T(1,128)}', space=vmem, size = 0x12000, scoped, tag = 'internal scratch']
  %s0 = inlined_call_operand.vmem [shape: bf16[128,64], index: 0, kind: input, shape index: {}]
  %s1 = inlined_call_operand.vmem [shape: bf16[128,64], index: 1, kind: input, shape index: {}]
  %s2 = inlined_call_operand.vmem [shape: f32[128,128], index: 2, kind: input, shape index: {}]
  %s3 = inlined_call_operand.vmem [shape: bf16[64,128], index: 3, kind: input, shape index: {}]
  %s4 = inlined_call_operand.vmem [shape: f32[1,128], index: 4, kind: input, shape index: {}]
  %s5 = inlined_call_operand.vmem [shape: bf16[128,128], index: 5, kind: input, shape index: {}]
  %s6 = inlined_call_operand.vmem [shape: bf16[128,128], index: 6, kind: input, shape index: {}]
  %s7 = inlined_call_operand.vmem [shape: f32[1,128], index: 7, kind: input, shape index: {}]
  %s8 = inlined_call_operand.vmem [shape: bf16[128,128], index: 8, kind: input, shape index: {}]
  %s9 = inlined_call_operand.vmem [shape: f32[1,128], index: 9, kind: input, shape index: {}]
  %s10 = inlined_call_operand.vmem [shape: bf16[128,128], index: 10, kind: input, shape index: {}]
  %s11 = inlined_call_operand.vmem [shape: f32[1,128], index: 11, kind: input, shape index: {}]
  %s12 = inlined_call_operand.vmem [shape: f32[1,8,128], index: 12, kind: output, shape index: {}]
  %s13 = sld [smem:[#allocation0]]
  $region58: #{base_model_forward.3} parent=0
    _
  %s15 = ssub.s32 1, %s13
  %s16 = scalar_select 0, %s15, %s13
  // Predicated region
  $region2: #{base_model_forward.3} parent=0 // pred_check
    _
  $region3: #{base_model_forward.3} parent=0 // pred_check_branch
    %18 = sbr.rel (0) target = $region5
  $region4: #{base_model_forward.3} parent=0 // pred_region
    _
  $region5: #{base_model_forward.3} parent=0 // pred_fallthru
    _
  // Predicated region
  $region6: #{base_model_forward.3} parent=0 // pred_check
    _
  $region7: #{base_model_forward.3} parent=0 // pred_check_branch
    %20 = sbr.rel (0) target = $region9
  $region8: #{base_model_forward.3} parent=0 // pred_region
    _
  $region9: #{base_model_forward.3} parent=0 // pred_fallthru
    _
  // Predicated region
  $region10: #{base_model_forward.3} parent=0 // pred_check
    _
  $region11: #{base_model_forward.3} parent=0 // pred_check_branch
    %22 = sbr.rel (0) target = $region13
  $region12: #{base_model_forward.3} parent=0 // pred_region
    _
  $region13: #{base_model_forward.3} parent=0 // pred_fallthru
    _
  // Predicated region
  $region14: #{base_model_forward.3} parent=0 // pred_check
    _
  $region15: #{base_model_forward.3} parent=0 // pred_check_branch
    %24 = sbr.rel (0) target = $region17
  $region16: #{base_model_forward.3} parent=0 // pred_region
    _
  $region17: #{base_model_forward.3} parent=0 // pred_fallthru
    _
  // Predicated region
  $region18: #{base_model_forward.3} parent=0 // pred_check
    _
  $region19: #{base_model_forward.3} parent=0 // pred_check_branch
    %26 = sbr.rel (0) target = $region21
  $region20: #{base_model_forward.3} parent=0 // pred_region
    _
  $region21: #{base_model_forward.3} parent=0 // pred_fallthru
    _
  // Predicated region
  $region22: #{base_model_forward.3} parent=0 // pred_check
    _
  $region23: #{base_model_forward.3} parent=0 // pred_check_branch
    %28 = sbr.rel (0) target = $region25
  $region24: #{base_model_forward.3} parent=0 // pred_region
    _
  $region25: #{base_model_forward.3} parent=0 // pred_fallthru
    _
  // Predicated region
  $region26: #{base_model_forward.3} parent=0 // pred_check
    _
  $region27: #{base_model_forward.3} parent=0 // pred_check_branch
    %30 = sbr.rel (0) target = $region29
  $region28: #{base_model_forward.3} parent=0 // pred_region
    _
  $region29: #{base_model_forward.3} parent=0 // pred_fallthru
    _
  // Predicated region
  $region30: #{base_model_forward.3} parent=0 // pred_check
    _
  $region31: #{base_model_forward.3} parent=0 // pred_check_branch
    %32 = sbr.rel (0) target = $region33
  $region32: #{base_model_forward.3} parent=0 // pred_region
    _
  $region33: #{base_model_forward.3} parent=0 // pred_fallthru
    _
  // Predicated region
  $region34: #{base_model_forward.3} parent=0 // pred_check
    _
  $region35: #{base_model_forward.3} parent=0 // pred_check_branch
    %34 = sbr.rel (0) target = $region37
  $region36: #{base_model_forward.3} parent=0 // pred_region
    _
  $region37: #{base_model_forward.3} parent=0 // pred_fallthru
    _
  // Predicated region
  $region38: #{base_model_forward.3} parent=0 // pred_check
    _
  $region39: #{base_model_forward.3} parent=0 // pred_check_branch
    %36 = sbr.rel (0) target = $region41
  $region40: #{base_model_forward.3} parent=0 // pred_region
    _
  $region41: #{base_model_forward.3} parent=0 // pred_fallthru
    _
  // Predicated region
  $region42: #{base_model_forward.3} parent=0 // pred_check
    _
  $region43: #{base_model_forward.3} parent=0 // pred_check_branch
    %38 = sbr.rel (0) target = $region45
  $region44: #{base_model_forward.3} parent=0 // pred_region
    _
  $region45: #{base_model_forward.3} parent=0 // pred_fallthru
    _
  // Predicated region
  $region46: #{base_model_forward.3} parent=0 // pred_check
    _
  $region47: #{base_model_forward.3} parent=0 // pred_check_branch
    %40 = sbr.rel (0) target = $region49
  $region48: #{base_model_forward.3} parent=0 // pred_region
    _
  $region49: #{base_model_forward.3} parent=0 // pred_fallthru
    _
  %v42 = vld [vmem:[%s0] sm:$0xf]
  %v43 = vld [vmem:[%s0 + $0x4] sm:$0xf]
  %v44 = vld [vmem:[%s0 + $0x8] sm:$0xf]
  %v45 = vld [vmem:[%s0 + $0xc] sm:$0xf]
  %v46 = vld [vmem:[%s0 + $0x10] sm:$0xf]
  %v47 = vld [vmem:[%s0 + $0x14] sm:$0xf]
  %v48 = vld [vmem:[%s0 + $0x18] sm:$0xf]
  %v49 = vld [vmem:[%s0 + $0x1c] sm:$0xf]
  %v50 = vld [vmem:[%s0 + $0x20] sm:$0xf]
  %v51 = vld [vmem:[%s0 + $0x24] sm:$0xf]
  %v52 = vld [vmem:[%s0 + $0x28] sm:$0xf]
  %v53 = vld [vmem:[%s0 + $0x2c] sm:$0xf]
  %v54 = vld [vmem:[%s0 + $0x30] sm:$0xf]
  %v55 = vld [vmem:[%s0 + $0x34] sm:$0xf]
  %v56 = vld [vmem:[%s0 + $0x38] sm:$0xf]
  %v57 = vld [vmem:[%s0 + $0x3c] sm:$0xf]
  %v58 = vld [vmem:[%s3] sm:$0xf]
  %v59 = vld [vmem:[%s3 + $0x4] sm:$0xf]
  %v60 = vld [vmem:[%s3 + $0x8] sm:$0xf]
  %v61 = vld [vmem:[%s3 + $0xc] sm:$0xf]
  %v62 = vld [vmem:[%s3 + $0x10] sm:$0xf]
  %v63 = vld [vmem:[%s3 + $0x14] sm:$0xf]
  %v64 = vld [vmem:[%s3 + $0x18] sm:$0xf]
  %v65 = vld [vmem:[%s3 + $0x1c] sm:$0xf]
  %v66 = vld [vmem:[%s4] sm:$0x1]
  %v68 = vlaneseq
  %v69 = vshrl.u32 %v68, 7
  %v70 = vsub.s32 0, %v69
  %v71 = vrot.slane %v66, %v70
  %v89 = vunpack.c.l.b16 %v42
  %v90 = vunpack.c.l.b16 %v43
  %v91 = vunpack.c.l.b16 %v44
  %v92 = vunpack.c.l.b16 %v45
  %v93 = vunpack.c.l.b16 %v46
  %v94 = vunpack.c.l.b16 %v47
  %v95 = vunpack.c.l.b16 %v48
  %v96 = vunpack.c.l.b16 %v49
  %v97 = vunpack.c.l.b16 %v50
  %v98 = vunpack.c.l.b16 %v51
  %v99 = vunpack.c.l.b16 %v52
  %v100 = vunpack.c.l.b16 %v53
  %v101 = vunpack.c.l.b16 %v54
  %v102 = vunpack.c.l.b16 %v55
  %v103 = vunpack.c.l.b16 %v56
  %v104 = vunpack.c.l.b16 %v57
  %v105 = vpack.c.b16 %v90, %v89
  %v106 = vpack.c.b16 %v92, %v91
  %v107 = vpack.c.b16 %v94, %v93
  %v108 = vpack.c.b16 %v96, %v95
  %v109 = vpack.c.b16 %v98, %v97
  %v110 = vpack.c.b16 %v100, %v99
  %v111 = vpack.c.b16 %v102, %v101
  %v112 = vpack.c.b16 %v104, %v103
  %v121 = vunpack.c.l.b16 %v58
  %v122 = vunpack.c.l.b16 %v59
  %v123 = vunpack.c.l.b16 %v60
  %v124 = vunpack.c.l.b16 %v61
  %v125 = vunpack.c.l.b16 %v62
  %v126 = vunpack.c.l.b16 %v63
  %v127 = vunpack.c.l.b16 %v64
  %v128 = vunpack.c.l.b16 %v65
  %v129 = vpack.c.b16 %v122, %v121
  %v130 = vpack.c.b16 %v124, %v123
  %v131 = vpack.c.b16 %v126, %v125
  %v132 = vpack.c.b16 %v128, %v127
  %vm137 = vcmask 523264
  %v139 = vsel %vm137, %v105, 0
  %v142 = vsel %vm137, %v106, 0
  %v145 = vsel %vm137, %v107, 0
  %v148 = vsel %vm137, %v108, 0
  %v151 = vsel %vm137, %v109, 0
  %v154 = vsel %vm137, %v110, 0
  %v157 = vsel %vm137, %v111, 0
  %v160 = vsel %vm137, %v112, 0
  %162 = vmatprep.subr.bf16.mxu0 0
  %163 = vmatpush1.bf16.msra.mxu0 %v129
  %164 = vmatprep.subr.bf16.mxu0 0
  %165 = vmatpush1.bf16.msra.mxu0 %v130
  %166 = vmatprep.subr.bf16.mxu0 0
  %167 = vmatpush1.bf16.msra.mxu0 %v131
  %168 = vmatprep.subr.bf16.mxu0 0
  %169 = vmatpush1.bf16.msra.mxu0 %v132
  %170 = vmatprep.subr.bf16.mxu0 0
  %171 = vmatpush1.bf16.msra.mxu0 0
  %172 = vmatprep.subr.bf16.mxu0 0
  %173 = vmatpush1.bf16.msra.mxu0 0
  %174 = vmatprep.subr.bf16.mxu0 0
  %175 = vmatpush1.bf16.msra.mxu0 0
  %176 = vmatprep.subr.bf16.mxu0 0
  %177 = vmatpush1.bf16.msra.mxu0 0
  %178 = vmatprep.subr.bf16.mxu0 0
  %179 = vmatpush1.bf16.msra.mxu0 0
  %180 = vmatprep.subr.bf16.mxu0 0
  %181 = vmatpush1.bf16.msra.mxu0 0
  %182 = vmatprep.subr.bf16.mxu0 0
  %183 = vmatpush1.bf16.msra.mxu0 0
  %184 = vmatprep.subr.bf16.mxu0 0
  %185 = vmatpush1.bf16.msra.mxu0 0
  %186 = vmatprep.subr.bf16.mxu0 0
  %187 = vmatpush1.bf16.msra.mxu0 0
  %188 = vmatprep.subr.bf16.mxu0 0
  %189 = vmatpush1.bf16.msra.mxu0 0
  %190 = vmatprep.subr.bf16.mxu0 0
  %191 = vmatpush1.bf16.msra.mxu0 0
  %192 = vmatprep.subr.bf16.mxu0 0
  %193 = vmatpush1.bf16.msra.mxu0 0
  %194 = vmatprep.mubr.bf16.mxu0 0
  %195 = vmatmul.mubr.bf16.gmra.mrb[0].mxu0 %v139
  %v196 = vpop.f32.mrb[0].mxu0
  %v197 = vadd.f32 %v71, %v196
  %v198 = vpop.f32.mrb[0].mxu0
  %v199 = vpop.f32.mrb[0].mxu0
  %v200 = vadd.f32 %v71, %v199
  %v201 = vpop.f32.mrb[0].mxu0
  %202 = vmatprep.mubr.bf16.mxu0 0
  %203 = vmatmul.mubr.bf16.gmra.mrb[0].mxu0 %v142
  %v204 = vpop.f32.mrb[0].mxu0
  %v205 = vadd.f32 %v71, %v204
  %v206 = vpop.f32.mrb[0].mxu0
  %v207 = vpop.f32.mrb[0].mxu0
  %v208 = vadd.f32 %v71, %v207
  %v209 = vpop.f32.mrb[0].mxu0
  %210 = vmatprep.mubr.bf16.mxu0 0
  %211 = vmatmul.mubr.bf16.gmra.mrb[0].mxu0 %v145
  %v212 = vpop.f32.mrb[0].mxu0
  %v213 = vadd.f32 %v71, %v212
  %v214 = vpop.f32.mrb[0].mxu0
  %v215 = vpop.f32.mrb[0].mxu0
  %v216 = vadd.f32 %v71, %v215
  %v217 = vpop.f32.mrb[0].mxu0
  %218 = vmatprep.mubr.bf16.mxu0 0
  %219 = vmatmul.mubr.bf16.gmra.mrb[0].mxu0 %v148
  %v220 = vpop.f32.mrb[0].mxu0
  %v221 = vadd.f32 %v71, %v220
  %v222 = vpop.f32.mrb[0].mxu0
  %v223 = vpop.f32.mrb[0].mxu0
  %v224 = vadd.f32 %v71, %v223
  %v225 = vpop.f32.mrb[0].mxu0
  %226 = vmatprep.mubr.bf16.mxu0 0
  %227 = vmatmul.mubr.bf16.gmra.mrb[0].mxu0 %v151
  %v228 = vpop.f32.mrb[0].mxu0
  %v229 = vadd.f32 %v71, %v228
  %v230 = vpop.f32.mrb[0].mxu0
  %v231 = vpop.f32.mrb[0].mxu0
  %v232 = vadd.f32 %v71, %v231
  %v233 = vpop.f32.mrb[0].mxu0
  %234 = vmatprep.mubr.bf16.mxu0 0
  %235 = vmatmul.mubr.bf16.gmra.mrb[0].mxu0 %v154
  %v236 = vpop.f32.mrb[0].mxu0
  %v237 = vadd.f32 %v71, %v236
  %v238 = vpop.f32.mrb[0].mxu0
  %v239 = vpop.f32.mrb[0].mxu0
  %v240 = vadd.f32 %v71, %v239
  %v241 = vpop.f32.mrb[0].mxu0
  %242 = vmatprep.mubr.bf16.mxu0 0
  %243 = vmatmul.mubr.bf16.gmra.mrb[0].mxu0 %v157
  %v244 = vpop.f32.mrb[0].mxu0
  %v245 = vadd.f32 %v71, %v244
  %v246 = vpop.f32.mrb[0].mxu0
  %v247 = vpop.f32.mrb[0].mxu0
  %v248 = vadd.f32 %v71, %v247
  %v249 = vpop.f32.mrb[0].mxu0
  %250 = vmatprep.mubr.bf16.mxu0 0
  %251 = vmatmul.mubr.bf16.gmra.mrb[0].mxu0 %v160
  %v252 = vpop.f32.mrb[0].mxu0
  %v253 = vadd.f32 %v71, %v252
  %v254 = vpop.f32.mrb[0].mxu0
  %v255 = vpop.f32.mrb[0].mxu0
  %v256 = vadd.f32 %v71, %v255
  %v257 = vpop.f32.mrb[0].mxu0
  %258 = vdwg.mxu0
  %v259 = vld [vmem:[%s1] sm:$0xf]
  %v260 = vld [vmem:[%s1 + $0x4] sm:$0xf]
  %v261 = vld [vmem:[%s1 + $0x8] sm:$0xf]
  %v262 = vld [vmem:[%s1 + $0xc] sm:$0xf]
  %v263 = vld [vmem:[%s1 + $0x10] sm:$0xf]
  %v264 = vld [vmem:[%s1 + $0x14] sm:$0xf]
  %v265 = vld [vmem:[%s1 + $0x18] sm:$0xf]
  %v266 = vld [vmem:[%s1 + $0x1c] sm:$0xf]
  %v267 = vld [vmem:[%s1 + $0x20] sm:$0xf]
  %v268 = vld [vmem:[%s1 + $0x24] sm:$0xf]
  %v269 = vld [vmem:[%s1 + $0x28] sm:$0xf]
  %v270 = vld [vmem:[%s1 + $0x2c] sm:$0xf]
  %v271 = vld [vmem:[%s1 + $0x30] sm:$0xf]
  %v272 = vld [vmem:[%s1 + $0x34] sm:$0xf]
  %v273 = vld [vmem:[%s1 + $0x38] sm:$0xf]
  %v274 = vld [vmem:[%s1 + $0x3c] sm:$0xf]
  %v291 = vunpack.c.l.b16 %v259
  %v292 = vunpack.c.l.b16 %v260
  %v293 = vunpack.c.l.b16 %v261
  %v294 = vunpack.c.l.b16 %v262
  %v295 = vunpack.c.l.b16 %v263
  %v296 = vunpack.c.l.b16 %v264
  %v297 = vunpack.c.l.b16 %v265
  %v298 = vunpack.c.l.b16 %v266
  %v299 = vunpack.c.l.b16 %v267
  %v300 = vunpack.c.l.b16 %v268
  %v301 = vunpack.c.l.b16 %v269
  %v302 = vunpack.c.l.b16 %v270
  %v303 = vunpack.c.l.b16 %v271
  %v304 = vunpack.c.l.b16 %v272
  %v305 = vunpack.c.l.b16 %v273
  %v306 = vunpack.c.l.b16 %v274
  %v307 = vpack.c.b16 %v292, %v291
  %v308 = vpack.c.b16 %v294, %v293
  %v309 = vpack.c.b16 %v296, %v295
  %v310 = vpack.c.b16 %v298, %v297
  %v311 = vpack.c.b16 %v300, %v299
  %v312 = vpack.c.b16 %v302, %v301
  %v313 = vpack.c.b16 %v304, %v303
  %v314 = vpack.c.b16 %v306, %v305
  %v316 = vsel %vm137, %v307, 0
  %v319 = vsel %vm137, %v308, 0
  %v322 = vsel %vm137, %v309, 0
  %v325 = vsel %vm137, %v310, 0
  %v328 = vsel %vm137, %v311, 0
  %v331 = vsel %vm137, %v312, 0
  %v334 = vsel %vm137, %v313, 0
  %v337 = vsel %vm137, %v314, 0
  %339 = vmatprep.subr.bf16.mxu0 0
  %340 = vmatpush1.bf16.msra.mxu0 %v129
  %341 = vmatprep.subr.bf16.mxu0 0
  %342 = vmatpush1.bf16.msra.mxu0 %v130
  %343 = vmatprep.subr.bf16.mxu0 0
  %344 = vmatpush1.bf16.msra.mxu0 %v131
  %345 = vmatprep.subr.bf16.mxu0 0
  %346 = vmatpush1.bf16.msra.mxu0 %v132
  %347 = vmatprep.subr.bf16.mxu0 0
  %348 = vmatpush1.bf16.msra.mxu0 0
  %349 = vmatprep.subr.bf16.mxu0 0
  %350 = vmatpush1.bf16.msra.mxu0 0
  %351 = vmatprep.subr.bf16.mxu0 0
  %352 = vmatpush1.bf16.msra.mxu0 0
  %353 = vmatprep.subr.bf16.mxu0 0
  %354 = vmatpush1.bf16.msra.mxu0 0
  %355 = vmatprep.subr.bf16.mxu0 0
  %356 = vmatpush1.bf16.msra.mxu0 0
  %357 = vmatprep.subr.bf16.mxu0 0
  %358 = vmatpush1.bf16.msra.mxu0 0
  %359 = vmatprep.subr.bf16.mxu0 0
  %360 = vmatpush1.bf16.msra.mxu0 0
  %361 = vmatprep.subr.bf16.mxu0 0
  %362 = vmatpush1.bf16.msra.mxu0 0
  %363 = vmatprep.subr.bf16.mxu0 0
  %364 = vmatpush1.bf16.msra.mxu0 0
  %365 = vmatprep.subr.bf16.mxu0 0
  %366 = vmatpush1.bf16.msra.mxu0 0
  %367 = vmatprep.subr.bf16.mxu0 0
  %368 = vmatpush1.bf16.msra.mxu0 0
  %369 = vmatprep.subr.bf16.mxu0 0
  %370 = vmatpush1.bf16.msra.mxu0 0
  %371 = vmatprep.mubr.bf16.mxu0 0
  %372 = vmatmul.mubr.bf16.gmra.mrb[0].mxu0 %v316
  %v373 = vpop.f32.mrb[0].mxu0
  %v374 = vadd.f32 %v71, %v373
  %v375 = vpop.f32.mrb[0].mxu0
  %v376 = vpop.f32.mrb[0].mxu0
  %v377 = vadd.f32 %v71, %v376
  %v378 = vpop.f32.mrb[0].mxu0
  %379 = vmatprep.mubr.bf16.mxu0 0
  %380 = vmatmul.mubr.bf16.gmra.mrb[0].mxu0 %v319
  %v381 = vpop.f32.mrb[0].mxu0
  %v382 = vadd.f32 %v71, %v381
  %v383 = vpop.f32.mrb[0].mxu0
  %v384 = vpop.f32.mrb[0].mxu0
  %v385 = vadd.f32 %v71, %v384
  %v386 = vpop.f32.mrb[0].mxu0
  %387 = vmatprep.mubr.bf16.mxu0 0
  %388 = vmatmul.mubr.bf16.gmra.mrb[0].mxu0 %v322
  %v389 = vpop.f32.mrb[0].mxu0
  %v390 = vadd.f32 %v71, %v389
  %v391 = vpop.f32.mrb[0].mxu0
  %v392 = vpop.f32.mrb[0].mxu0
  %v393 = vadd.f32 %v71, %v392
  %v394 = vpop.f32.mrb[0].mxu0
  %395 = vmatprep.mubr.bf16.mxu0 0
  %396 = vmatmul.mubr.bf16.gmra.mrb[0].mxu0 %v325
  %v397 = vpop.f32.mrb[0].mxu0
  %v398 = vadd.f32 %v71, %v397
  %v399 = vpop.f32.mrb[0].mxu0
  %v400 = vpop.f32.mrb[0].mxu0
  %v401 = vadd.f32 %v71, %v400
  %v402 = vpop.f32.mrb[0].mxu0
  %403 = vmatprep.mubr.bf16.mxu0 0
  %404 = vmatmul.mubr.bf16.gmra.mrb[0].mxu0 %v328
  %v405 = vpop.f32.mrb[0].mxu0
  %v406 = vadd.f32 %v71, %v405
  %v407 = vpop.f32.mrb[0].mxu0
  %v408 = vpop.f32.mrb[0].mxu0
  %v409 = vadd.f32 %v71, %v408
  %v410 = vpop.f32.mrb[0].mxu0
  %411 = vmatprep.mubr.bf16.mxu0 0
  %412 = vmatmul.mubr.bf16.gmra.mrb[0].mxu0 %v331
  %v413 = vpop.f32.mrb[0].mxu0
  %v414 = vadd.f32 %v71, %v413
  %v415 = vpop.f32.mrb[0].mxu0
  %v416 = vpop.f32.mrb[0].mxu0
  %v417 = vadd.f32 %v71, %v416
  %v418 = vpop.f32.mrb[0].mxu0
  %419 = vmatprep.mubr.bf16.mxu0 0
  %420 = vmatmul.mubr.bf16.gmra.mrb[0].mxu0 %v334
  %v421 = vpop.f32.mrb[0].mxu0
  %v422 = vadd.f32 %v71, %v421
  %v423 = vpop.f32.mrb[0].mxu0
  %v424 = vpop.f32.mrb[0].mxu0
  %v425 = vadd.f32 %v71, %v424
  %v426 = vpop.f32.mrb[0].mxu0
  %427 = vmatprep.mubr.bf16.mxu0 0
  %428 = vmatmul.mubr.bf16.gmra.mrb[0].mxu0 %v337
  %v429 = vpop.f32.mrb[0].mxu0
  %v430 = vadd.f32 %v71, %v429
  %v431 = vpop.f32.mrb[0].mxu0
  %v432 = vpop.f32.mrb[0].mxu0
  %v433 = vadd.f32 %v71, %v432
  %v434 = vpop.f32.mrb[0].mxu0
  %435 = vdwg.mxu0
  %v436 = vpack.c.bf16 %v200, %v197
  %v437 = vpack.c.bf16 %v208, %v205
  %v438 = vpack.c.bf16 %v216, %v213
  %v439 = vpack.c.bf16 %v224, %v221
  %v440 = vpack.c.bf16 %v232, %v229
  %v441 = vpack.c.bf16 %v240, %v237
  %v442 = vpack.c.bf16 %v248, %v245
  %v443 = vpack.c.bf16 %v256, %v253
  %v444 = vld [vmem:[%s5] sm:$0xf]
  %v445 = vld [vmem:[%s5 + $0x4] sm:$0xf]
  %v446 = vld [vmem:[%s5 + $0x8] sm:$0xf]
  %v447 = vld [vmem:[%s5 + $0xc] sm:$0xf]
  %v448 = vld [vmem:[%s5 + $0x10] sm:$0xf]
  %v449 = vld [vmem:[%s5 + $0x14] sm:$0xf]
  %v450 = vld [vmem:[%s5 + $0x18] sm:$0xf]
  %v451 = vld [vmem:[%s5 + $0x1c] sm:$0xf]
  %v452 = vld [vmem:[%s5 + $0x20] sm:$0xf]
  %v453 = vld [vmem:[%s5 + $0x24] sm:$0xf]
  %v454 = vld [vmem:[%s5 + $0x28] sm:$0xf]
  %v455 = vld [vmem:[%s5 + $0x2c] sm:$0xf]
  %v456 = vld [vmem:[%s5 + $0x30] sm:$0xf]
  %v457 = vld [vmem:[%s5 + $0x34] sm:$0xf]
  %v458 = vld [vmem:[%s5 + $0x38] sm:$0xf]
  %v459 = vld [vmem:[%s5 + $0x3c] sm:$0xf]
  %v460 = vpack.c.bf16 %v377, %v374
  %v461 = vpack.c.bf16 %v385, %v382
  %v462 = vpack.c.bf16 %v393, %v390
  %v463 = vpack.c.bf16 %v401, %v398
  %v464 = vpack.c.bf16 %v409, %v406
  %v465 = vpack.c.bf16 %v417, %v414
  %v466 = vpack.c.bf16 %v425, %v422
  %v467 = vpack.c.bf16 %v433, %v430
  %v468 = vld [vmem:[%s6] sm:$0xf]
  %v469 = vld [vmem:[%s6 + $0x4] sm:$0xf]
  %v470 = vld [vmem:[%s6 + $0x8] sm:$0xf]
  %v471 = vld [vmem:[%s6 + $0xc] sm:$0xf]
  %v472 = vld [vmem:[%s6 + $0x10] sm:$0xf]
  %v473 = vld [vmem:[%s6 + $0x14] sm:$0xf]
  %v474 = vld [vmem:[%s6 + $0x18] sm:$0xf]
  %v475 = vld [vmem:[%s6 + $0x1c] sm:$0xf]
  %v476 = vld [vmem:[%s6 + $0x20] sm:$0xf]
  %v477 = vld [vmem:[%s6 + $0x24] sm:$0xf]
  %v478 = vld [vmem:[%s6 + $0x28] sm:$0xf]
  %v479 = vld [vmem:[%s6 + $0x2c] sm:$0xf]
  %v480 = vld [vmem:[%s6 + $0x30] sm:$0xf]
  %v481 = vld [vmem:[%s6 + $0x34] sm:$0xf]
  %v482 = vld [vmem:[%s6 + $0x38] sm:$0xf]
  %v483 = vld [vmem:[%s6 + $0x3c] sm:$0xf]
  %v500 = vunpack.c.l.b16 %v468
  %v501 = vunpack.c.l.b16 %v469
  %v502 = vunpack.c.l.b16 %v470
  %v503 = vunpack.c.l.b16 %v471
  %v504 = vunpack.c.l.b16 %v472
  %v505 = vunpack.c.l.b16 %v473
  %v506 = vunpack.c.l.b16 %v474
  %v507 = vunpack.c.l.b16 %v475
  %v508 = vunpack.c.l.b16 %v476
  %v509 = vunpack.c.l.b16 %v477
  %v510 = vunpack.c.l.b16 %v478
  %v511 = vunpack.c.l.b16 %v479
  %v512 = vunpack.c.l.b16 %v480
  %v513 = vunpack.c.l.b16 %v481
  %v514 = vunpack.c.l.b16 %v482
  %v515 = vunpack.c.l.b16 %v483
  %v516 = vpack.c.b16 %v501, %v500
  %v517 = vpack.c.b16 %v503, %v502
  %v518 = vpack.c.b16 %v505, %v504
  %v519 = vpack.c.b16 %v507, %v506
  %v520 = vpack.c.b16 %v509, %v508
  %v521 = vpack.c.b16 %v511, %v510
  %v522 = vpack.c.b16 %v513, %v512
  %v523 = vpack.c.b16 %v515, %v514
  %532 = vmatprep.subr.bf16.mxu0 0
  %533 = vmatpush1.bf16.msra.mxu0 %v516
  %534 = vmatprep.subr.bf16.mxu0 0
  %535 = vmatpush1.bf16.msra.mxu0 %v517
  %536 = vmatprep.subr.bf16.mxu0 0
  %537 = vmatpush1.bf16.msra.mxu0 %v518
  %538 = vmatprep.subr.bf16.mxu0 0
  %539 = vmatpush1.bf16.msra.mxu0 %v519
  %540 = vmatprep.subr.bf16.mxu0 0
  %541 = vmatpush1.bf16.msra.mxu0 %v520
  %542 = vmatprep.subr.bf16.mxu0 0
  %543 = vmatpush1.bf16.msra.mxu0 %v521
  %544 = vmatprep.subr.bf16.mxu0 0
  %545 = vmatpush1.bf16.msra.mxu0 %v522
  %546 = vmatprep.subr.bf16.mxu0 0
  %547 = vmatpush1.bf16.msra.mxu0 %v523
  %548 = vmatprep.subr.bf16.mxu0 0
  %549 = vmatpush1.bf16.msra.mxu0 0
  %550 = vmatprep.subr.bf16.mxu0 0
  %551 = vmatpush1.bf16.msra.mxu0 0
  %552 = vmatprep.subr.bf16.mxu0 0
  %553 = vmatpush1.bf16.msra.mxu0 0
  %554 = vmatprep.subr.bf16.mxu0 0
  %555 = vmatpush1.bf16.msra.mxu0 0
  %556 = vmatprep.subr.bf16.mxu0 0
  %557 = vmatpush1.bf16.msra.mxu0 0
  %558 = vmatprep.subr.bf16.mxu0 0
  %559 = vmatpush1.bf16.msra.mxu0 0
  %560 = vmatprep.subr.bf16.mxu0 0
  %561 = vmatpush1.bf16.msra.mxu0 0
  %562 = vmatprep.subr.bf16.mxu0 0
  %563 = vmatpush1.bf16.msra.mxu0 0
  %564 = vmatprep.mubr.bf16.mxu0 0
  %565 = vmatmul.mubr.bf16.gmra.mrb[0].mxu0 %v460
  %v566 = vpop.f32.mrb[0].mxu0
  %v567 = vadd.f32 0.0, %v566
  %v568 = vpop.f32.mrb[0].mxu0
  %v569 = vpop.f32.mrb[0].mxu0
  %v570 = vadd.f32 0.0, %v569
  %v571 = vpop.f32.mrb[0].mxu0
  %572 = vmatprep.mubr.bf16.mxu0 0
  %573 = vmatmul.mubr.bf16.gmra.mrb[0].mxu0 %v461
  %v574 = vpop.f32.mrb[0].mxu0
  %v575 = vadd.f32 0.0, %v574
  %v576 = vpop.f32.mrb[0].mxu0
  %v577 = vpop.f32.mrb[0].mxu0
  %v578 = vadd.f32 0.0, %v577
  %v579 = vpop.f32.mrb[0].mxu0
  %580 = vmatprep.mubr.bf16.mxu0 0
  %581 = vmatmul.mubr.bf16.gmra.mrb[0].mxu0 %v462
  %v582 = vpop.f32.mrb[0].mxu0
  %v583 = vadd.f32 0.0, %v582
  %v584 = vpop.f32.mrb[0].mxu0
  %v585 = vpop.f32.mrb[0].mxu0
  %v586 = vadd.f32 0.0, %v585
  %v587 = vpop.f32.mrb[0].mxu0
  %588 = vmatprep.mubr.bf16.mxu0 0
  %589 = vmatmul.mubr.bf16.gmra.mrb[0].mxu0 %v463
  %v590 = vpop.f32.mrb[0].mxu0
  %v591 = vadd.f32 0.0, %v590
  %v592 = vpop.f32.mrb[0].mxu0
  %v593 = vpop.f32.mrb[0].mxu0
  %v594 = vadd.f32 0.0, %v593
  %v595 = vpop.f32.mrb[0].mxu0
  %596 = vmatprep.mubr.bf16.mxu0 0
  %597 = vmatmul.mubr.bf16.gmra.mrb[0].mxu0 %v464
  %v598 = vpop.f32.mrb[0].mxu0
  %v599 = vadd.f32 0.0, %v598
  %v600 = vpop.f32.mrb[0].mxu0
  %v601 = vpop.f32.mrb[0].mxu0
  %v602 = vadd.f32 0.0, %v601
  %v603 = vpop.f32.mrb[0].mxu0
  %604 = vmatprep.mubr.bf16.mxu0 0
  %605 = vmatmul.mubr.bf16.gmra.mrb[0].mxu0 %v465
  %v606 = vpop.f32.mrb[0].mxu0
  %v607 = vadd.f32 0.0, %v606
  %v608 = vpop.f32.mrb[0].mxu0
  %v609 = vpop.f32.mrb[0].mxu0
  %v610 = vadd.f32 0.0, %v609
  %v611 = vpop.f32.mrb[0].mxu0
  %612 = vmatprep.mubr.bf16.mxu0 0
  %613 = vmatmul.mubr.bf16.gmra.mrb[0].mxu0 %v466
  %v614 = vpop.f32.mrb[0].mxu0
  %v615 = vadd.f32 0.0, %v614
  %v616 = vpop.f32.mrb[0].mxu0
  %v617 = vpop.f32.mrb[0].mxu0
  %v618 = vadd.f32 0.0, %v617
  %v619 = vpop.f32.mrb[0].mxu0
  %620 = vmatprep.mubr.bf16.mxu0 0
  %621 = vmatmul.mubr.bf16.gmra.mrb[0].mxu0 %v467
  %v622 = vpop.f32.mrb[0].mxu0
  %v623 = vadd.f32 0.0, %v622
  %v624 = vpop.f32.mrb[0].mxu0
  %v625 = vpop.f32.mrb[0].mxu0
  %v626 = vadd.f32 0.0, %v625
  %v627 = vpop.f32.mrb[0].mxu0
  %628 = vdwg.mxu0
  %v645 = vunpack.c.l.b16 %v444
  %v646 = vunpack.c.l.b16 %v445
  %v647 = vunpack.c.l.b16 %v446
  %v648 = vunpack.c.l.b16 %v447
  %v649 = vunpack.c.l.b16 %v448
  %v650 = vunpack.c.l.b16 %v449
  %v651 = vunpack.c.l.b16 %v450
  %v652 = vunpack.c.l.b16 %v451
  %v653 = vunpack.c.l.b16 %v452
  %v654 = vunpack.c.l.b16 %v453
  %v655 = vunpack.c.l.b16 %v454
  %v656 = vunpack.c.l.b16 %v455
  %v657 = vunpack.c.l.b16 %v456
  %v658 = vunpack.c.l.b16 %v457
  %v659 = vunpack.c.l.b16 %v458
  %v660 = vunpack.c.l.b16 %v459
  %v661 = vpack.c.b16 %v646, %v645
  %v662 = vpack.c.b16 %v648, %v647
  %v663 = vpack.c.b16 %v650, %v649
  %v664 = vpack.c.b16 %v652, %v651
  %v665 = vpack.c.b16 %v654, %v653
  %v666 = vpack.c.b16 %v656, %v655
  %v667 = vpack.c.b16 %v658, %v657
  %v668 = vpack.c.b16 %v660, %v659
  %677 = vmatprep.subr.bf16.mxu0 0
  %678 = vmatpush1.bf16.msra.mxu0 %v661
  %679 = vmatprep.subr.bf16.mxu0 0
  %680 = vmatpush1.bf16.msra.mxu0 %v662
  %681 = vmatprep.subr.bf16.mxu0 0
  %682 = vmatpush1.bf16.msra.mxu0 %v663
  %683 = vmatprep.subr.bf16.mxu0 0
  %684 = vmatpush1.bf16.msra.mxu0 %v664
  %685 = vmatprep.subr.bf16.mxu0 0
  %686 = vmatpush1.bf16.msra.mxu0 %v665
  %687 = vmatprep.subr.bf16.mxu0 0
  %688 = vmatpush1.bf16.msra.mxu0 %v666
  %689 = vmatprep.subr.bf16.mxu0 0
  %690 = vmatpush1.bf16.msra.mxu0 %v667
  %691 = vmatprep.subr.bf16.mxu0 0
  %692 = vmatpush1.bf16.msra.mxu0 %v668
  %693 = vmatprep.subr.bf16.mxu0 0
  %694 = vmatpush1.bf16.msra.mxu0 0
  %695 = vmatprep.subr.bf16.mxu0 0
  %696 = vmatpush1.bf16.msra.mxu0 0
  %697 = vmatprep.subr.bf16.mxu0 0
  %698 = vmatpush1.bf16.msra.mxu0 0
  %699 = vmatprep.subr.bf16.mxu0 0
  %700 = vmatpush1.bf16.msra.mxu0 0
  %701 = vmatprep.subr.bf16.mxu0 0
  %702 = vmatpush1.bf16.msra.mxu0 0
  %703 = vmatprep.subr.bf16.mxu0 0
  %704 = vmatpush1.bf16.msra.mxu0 0
  %705 = vmatprep.subr.bf16.mxu0 0
  %706 = vmatpush1.bf16.msra.mxu0 0
  %707 = vmatprep.subr.bf16.mxu0 0
  %708 = vmatpush1.bf16.msra.mxu0 0
  %709 = vmatprep.mubr.bf16.mxu0 0
  %710 = vmatmul.mubr.bf16.gmra.mrb[0].mxu0 %v436
  %v711 = vpop.f32.mrb[0].mxu0
  %v712 = vadd.f32 %v567, %v711
  %v713 = vpop.f32.mrb[0].mxu0
  %v714 = vpop.f32.mrb[0].mxu0
  %v715 = vadd.f32 %v570, %v714
  %v716 = vpop.f32.mrb[0].mxu0
  %717 = vmatprep.mubr.bf16.mxu0 0
  %718 = vmatmul.mubr.bf16.gmra.mrb[0].mxu0 %v437
  %v719 = vpop.f32.mrb[0].mxu0
  %v720 = vadd.f32 %v575, %v719
  %v721 = vpop.f32.mrb[0].mxu0
  %v722 = vpop.f32.mrb[0].mxu0
  %v723 = vadd.f32 %v578, %v722
  %v724 = vpop.f32.mrb[0].mxu0
  %725 = vmatprep.mubr.bf16.mxu0 0
  %726 = vmatmul.mubr.bf16.gmra.mrb[0].mxu0 %v438
  %v727 = vpop.f32.mrb[0].mxu0
  %v728 = vadd.f32 %v583, %v727
  %v729 = vpop.f32.mrb[0].mxu0
  %v730 = vpop.f32.mrb[0].mxu0
  %v731 = vadd.f32 %v586, %v730
  %v732 = vpop.f32.mrb[0].mxu0
  %733 = vmatprep.mubr.bf16.mxu0 0
  %734 = vmatmul.mubr.bf16.gmra.mrb[0].mxu0 %v439
  %v735 = vpop.f32.mrb[0].mxu0
  %v736 = vadd.f32 %v591, %v735
  %v737 = vpop.f32.mrb[0].mxu0
  %v738 = vpop.f32.mrb[0].mxu0
  %v739 = vadd.f32 %v594, %v738
  %v740 = vpop.f32.mrb[0].mxu0
  %741 = vmatprep.mubr.bf16.mxu0 0
  %742 = vmatmul.mubr.bf16.gmra.mrb[0].mxu0 %v440
  %v743 = vpop.f32.mrb[0].mxu0
  %v744 = vadd.f32 %v599, %v743
  %v745 = vpop.f32.mrb[0].mxu0
  %v746 = vpop.f32.mrb[0].mxu0
  %v747 = vadd.f32 %v602, %v746
  %v748 = vpop.f32.mrb[0].mxu0
  %749 = vmatprep.mubr.bf16.mxu0 0
  %750 = vmatmul.mubr.bf16.gmra.mrb[0].mxu0 %v441
  %v751 = vpop.f32.mrb[0].mxu0
  %v752 = vadd.f32 %v607, %v751
  %v753 = vpop.f32.mrb[0].mxu0
  %v754 = vpop.f32.mrb[0].mxu0
  %v755 = vadd.f32 %v610, %v754
  %v756 = vpop.f32.mrb[0].mxu0
  %757 = vmatprep.mubr.bf16.mxu0 0
  %758 = vmatmul.mubr.bf16.gmra.mrb[0].mxu0 %v442
  %v759 = vpop.f32.mrb[0].mxu0
  %v760 = vadd.f32 %v615, %v759
  %v761 = vpop.f32.mrb[0].mxu0
  %v762 = vpop.f32.mrb[0].mxu0
  %v763 = vadd.f32 %v618, %v762
  %v764 = vpop.f32.mrb[0].mxu0
  %765 = vmatprep.mubr.bf16.mxu0 0
  %766 = vmatmul.mubr.bf16.gmra.mrb[0].mxu0 %v443
  %v767 = vpop.f32.mrb[0].mxu0
  %v768 = vadd.f32 %v623, %v767
  %v769 = vpop.f32.mrb[0].mxu0
  %v770 = vpop.f32.mrb[0].mxu0
  %v771 = vadd.f32 %v626, %v770
  %v772 = vpop.f32.mrb[0].mxu0
  %773 = vdwg.mxu0
  %v774 = vld [vmem:[%s7] sm:$0x1]
  %v776 = vlaneseq
  %v777 = vshrl.u32 %v776, 7
  %v778 = vsub.s32 0, %v777
  %v779 = vrot.slane %v774, %v778
  %v781 = vadd.f32 %v712, %v779
  %v782 = vadd.f32 %v715, %v779
  %v783 = vadd.f32 %v720, %v779
  %v784 = vadd.f32 %v723, %v779
  %v785 = vadd.f32 %v728, %v779
  %v786 = vadd.f32 %v731, %v779
  %v787 = vadd.f32 %v736, %v779
  %v788 = vadd.f32 %v739, %v779
  %v789 = vadd.f32 %v744, %v779
  %v790 = vadd.f32 %v747, %v779
  %v791 = vadd.f32 %v752, %v779
  %v792 = vadd.f32 %v755, %v779
  %v793 = vadd.f32 %v760, %v779
  %v794 = vadd.f32 %v763, %v779
  %v795 = vadd.f32 %v768, %v779
  %v796 = vadd.f32 %v771, %v779
  %v797 = vmax.f32 %v781, 0.0
  %v798 = vmax.f32 %v782, 0.0
  %v799 = vmax.f32 %v783, 0.0
  %v800 = vmax.f32 %v784, 0.0
  %v801 = vmax.f32 %v785, 0.0
  %v802 = vmax.f32 %v786, 0.0
  %v803 = vmax.f32 %v787, 0.0
  %v804 = vmax.f32 %v788, 0.0
  %v805 = vmax.f32 %v789, 0.0
  %v806 = vmax.f32 %v790, 0.0
  %v807 = vmax.f32 %v791, 0.0
  %v808 = vmax.f32 %v792, 0.0
  %v809 = vmax.f32 %v793, 0.0
  %v810 = vmax.f32 %v794, 0.0
  %v811 = vmax.f32 %v795, 0.0
  %v812 = vmax.f32 %v796, 0.0
  %v813 = vpack.c.bf16 %v798, %v797
  %v814 = vpack.c.bf16 %v800, %v799
  %v815 = vpack.c.bf16 %v802, %v801
  %v816 = vpack.c.bf16 %v804, %v803
  %v817 = vpack.c.bf16 %v806, %v805
  %v818 = vpack.c.bf16 %v808, %v807
  %v819 = vpack.c.bf16 %v810, %v809
  %v820 = vpack.c.bf16 %v812, %v811
  %v821 = vld [vmem:[%s8] sm:$0xf]
  %v822 = vld [vmem:[%s8 + $0x4] sm:$0xf]
  %v823 = vld [vmem:[%s8 + $0x8] sm:$0xf]
  %v824 = vld [vmem:[%s8 + $0xc] sm:$0xf]
  %v825 = vld [vmem:[%s8 + $0x10] sm:$0xf]
  %v826 = vld [vmem:[%s8 + $0x14] sm:$0xf]
  %v827 = vld [vmem:[%s8 + $0x18] sm:$0xf]
  %v828 = vld [vmem:[%s8 + $0x1c] sm:$0xf]
  %v829 = vld [vmem:[%s8 + $0x20] sm:$0xf]
  %v830 = vld [vmem:[%s8 + $0x24] sm:$0xf]
  %v831 = vld [vmem:[%s8 + $0x28] sm:$0xf]
  %v832 = vld [vmem:[%s8 + $0x2c] sm:$0xf]
  %v833 = vld [vmem:[%s8 + $0x30] sm:$0xf]
  %v834 = vld [vmem:[%s8 + $0x34] sm:$0xf]
  %v835 = vld [vmem:[%s8 + $0x38] sm:$0xf]
  %v836 = vld [vmem:[%s8 + $0x3c] sm:$0xf]
  %v837 = vld [vmem:[%s9] sm:$0x1]
  %v839 = vlaneseq
  %v840 = vshrl.u32 %v839, 7
  %v841 = vsub.s32 0, %v840
  %v842 = vrot.slane %v837, %v841
  %v860 = vunpack.c.l.b16 %v821
  %v861 = vunpack.c.l.b16 %v822
  %v862 = vunpack.c.l.b16 %v823
  %v863 = vunpack.c.l.b16 %v824
  %v864 = vunpack.c.l.b16 %v825
  %v865 = vunpack.c.l.b16 %v826
  %v866 = vunpack.c.l.b16 %v827
  %v867 = vunpack.c.l.b16 %v828
  %v868 = vunpack.c.l.b16 %v829
  %v869 = vunpack.c.l.b16 %v830
  %v870 = vunpack.c.l.b16 %v831
  %v871 = vunpack.c.l.b16 %v832
  %v872 = vunpack.c.l.b16 %v833
  %v873 = vunpack.c.l.b16 %v834
  %v874 = vunpack.c.l.b16 %v835
  %v875 = vunpack.c.l.b16 %v836
  %v876 = vpack.c.b16 %v861, %v860
  %v877 = vpack.c.b16 %v863, %v862
  %v878 = vpack.c.b16 %v865, %v864
  %v879 = vpack.c.b16 %v867, %v866
  %v880 = vpack.c.b16 %v869, %v868
  %v881 = vpack.c.b16 %v871, %v870
  %v882 = vpack.c.b16 %v873, %v872
  %v883 = vpack.c.b16 %v875, %v874
  %892 = vmatprep.subr.bf16.mxu0 0
  %893 = vmatpush1.bf16.msra.mxu0 %v876
  %894 = vmatprep.subr.bf16.mxu0 0
  %895 = vmatpush1.bf16.msra.mxu0 %v877
  %896 = vmatprep.subr.bf16.mxu0 0
  %897 = vmatpush1.bf16.msra.mxu0 %v878
  %898 = vmatprep.subr.bf16.mxu0 0
  %899 = vmatpush1.bf16.msra.mxu0 %v879
  %900 = vmatprep.subr.bf16.mxu0 0
  %901 = vmatpush1.bf16.msra.mxu0 %v880
  %902 = vmatprep.subr.bf16.mxu0 0
  %903 = vmatpush1.bf16.msra.mxu0 %v881
  %904 = vmatprep.subr.bf16.mxu0 0
  %905 = vmatpush1.bf16.msra.mxu0 %v882
  %906 = vmatprep.subr.bf16.mxu0 0
  %907 = vmatpush1.bf16.msra.mxu0 %v883
  %908 = vmatprep.subr.bf16.mxu0 0
  %909 = vmatpush1.bf16.msra.mxu0 0
  %910 = vmatprep.subr.bf16.mxu0 0
  %911 = vmatpush1.bf16.msra.mxu0 0
  %912 = vmatprep.subr.bf16.mxu0 0
  %913 = vmatpush1.bf16.msra.mxu0 0
  %914 = vmatprep.subr.bf16.mxu0 0
  %915 = vmatpush1.bf16.msra.mxu0 0
  %916 = vmatprep.subr.bf16.mxu0 0
  %917 = vmatpush1.bf16.msra.mxu0 0
  %918 = vmatprep.subr.bf16.mxu0 0
  %919 = vmatpush1.bf16.msra.mxu0 0
  %920 = vmatprep.subr.bf16.mxu0 0
  %921 = vmatpush1.bf16.msra.mxu0 0
  %922 = vmatprep.subr.bf16.mxu0 0
  %923 = vmatpush1.bf16.msra.mxu0 0
  %924 = vmatprep.mubr.bf16.mxu0 0
  %925 = vmatmul.mubr.bf16.gmra.mrb[0].mxu0 %v813
  %v926 = vpop.f32.mrb[0].mxu0
  %v927 = vadd.f32 %v842, %v926
  %v928 = vpop.f32.mrb[0].mxu0
  %v929 = vpop.f32.mrb[0].mxu0
  %v930 = vadd.f32 %v842, %v929
  %v931 = vpop.f32.mrb[0].mxu0
  %932 = vmatprep.mubr.bf16.mxu0 0
  %933 = vmatmul.mubr.bf16.gmra.mrb[0].mxu0 %v814
  %v934 = vpop.f32.mrb[0].mxu0
  %v935 = vadd.f32 %v842, %v934
  %v936 = vpop.f32.mrb[0].mxu0
  %v937 = vpop.f32.mrb[0].mxu0
  %v938 = vadd.f32 %v842, %v937
  %v939 = vpop.f32.mrb[0].mxu0
  %940 = vmatprep.mubr.bf16.mxu0 0
  %941 = vmatmul.mubr.bf16.gmra.mrb[0].mxu0 %v815
  %v942 = vpop.f32.mrb[0].mxu0
  %v943 = vadd.f32 %v842, %v942
  %v944 = vpop.f32.mrb[0].mxu0
  %v945 = vpop.f32.mrb[0].mxu0
  %v946 = vadd.f32 %v842, %v945
  %v947 = vpop.f32.mrb[0].mxu0
  %948 = vmatprep.mubr.bf16.mxu0 0
  %949 = vmatmul.mubr.bf16.gmra.mrb[0].mxu0 %v816
  %v950 = vpop.f32.mrb[0].mxu0
  %v951 = vadd.f32 %v842, %v950
  %v952 = vpop.f32.mrb[0].mxu0
  %v953 = vpop.f32.mrb[0].mxu0
  %v954 = vadd.f32 %v842, %v953
  %v955 = vpop.f32.mrb[0].mxu0
  %956 = vmatprep.mubr.bf16.mxu0 0
  %957 = vmatmul.mubr.bf16.gmra.mrb[0].mxu0 %v817
  %v958 = vpop.f32.mrb[0].mxu0
  %v959 = vadd.f32 %v842, %v958
  %v960 = vpop.f32.mrb[0].mxu0
  %v961 = vpop.f32.mrb[0].mxu0
  %v962 = vadd.f32 %v842, %v961
  %v963 = vpop.f32.mrb[0].mxu0
  %964 = vmatprep.mubr.bf16.mxu0 0
  %965 = vmatmul.mubr.bf16.gmra.mrb[0].mxu0 %v818
  %v966 = vpop.f32.mrb[0].mxu0
  %v967 = vadd.f32 %v842, %v966
  %v968 = vpop.f32.mrb[0].mxu0
  %v969 = vpop.f32.mrb[0].mxu0
  %v970 = vadd.f32 %v842, %v969
  %v971 = vpop.f32.mrb[0].mxu0
  %972 = vmatprep.mubr.bf16.mxu0 0
  %973 = vmatmul.mubr.bf16.gmra.mrb[0].mxu0 %v819
  %v974 = vpop.f32.mrb[0].mxu0
  %v975 = vadd.f32 %v842, %v974
  %v976 = vpop.f32.mrb[0].mxu0
  %v977 = vpop.f32.mrb[0].mxu0
  %v978 = vadd.f32 %v842, %v977
  %v979 = vpop.f32.mrb[0].mxu0
  %980 = vmatprep.mubr.bf16.mxu0 0
  %981 = vmatmul.mubr.bf16.gmra.mrb[0].mxu0 %v820
  %v982 = vpop.f32.mrb[0].mxu0
  %v983 = vadd.f32 %v842, %v982
  %v984 = vpop.f32.mrb[0].mxu0
  %v985 = vpop.f32.mrb[0].mxu0
  %v986 = vadd.f32 %v842, %v985
  %v987 = vpop.f32.mrb[0].mxu0
  %988 = vdwg.mxu0
  %v989 = vmax.f32 %v927, 0.0
  %v990 = vmax.f32 %v930, 0.0
  %v991 = vmax.f32 %v935, 0.0
  %v992 = vmax.f32 %v938, 0.0
  %v993 = vmax.f32 %v943, 0.0
  %v994 = vmax.f32 %v946, 0.0
  %v995 = vmax.f32 %v951, 0.0
  %v996 = vmax.f32 %v954, 0.0
  %v997 = vmax.f32 %v959, 0.0
  %v998 = vmax.f32 %v962, 0.0
  %v999 = vmax.f32 %v967, 0.0
  %v1000 = vmax.f32 %v970, 0.0
  %v1001 = vmax.f32 %v975, 0.0
  %v1002 = vmax.f32 %v978, 0.0
  %v1003 = vmax.f32 %v983, 0.0
  %v1004 = vmax.f32 %v986, 0.0
  %v1005 = vpack.c.bf16 %v990, %v989
  %v1006 = vpack.c.bf16 %v992, %v991
  %v1007 = vpack.c.bf16 %v994, %v993
  %v1008 = vpack.c.bf16 %v996, %v995
  %v1009 = vpack.c.bf16 %v998, %v997
  %v1010 = vpack.c.bf16 %v1000, %v999
  %v1011 = vpack.c.bf16 %v1002, %v1001
  %v1012 = vpack.c.bf16 %v1004, %v1003
  %v1013 = vld [vmem:[%s10] sm:$0xf]
  %v1014 = vld [vmem:[%s10 + $0x4] sm:$0xf]
  %v1015 = vld [vmem:[%s10 + $0x8] sm:$0xf]
  %v1016 = vld [vmem:[%s10 + $0xc] sm:$0xf]
  %v1017 = vld [vmem:[%s10 + $0x10] sm:$0xf]
  %v1018 = vld [vmem:[%s10 + $0x14] sm:$0xf]
  %v1019 = vld [vmem:[%s10 + $0x18] sm:$0xf]
  %v1020 = vld [vmem:[%s10 + $0x1c] sm:$0xf]
  %v1021 = vld [vmem:[%s10 + $0x20] sm:$0xf]
  %v1022 = vld [vmem:[%s10 + $0x24] sm:$0xf]
  %v1023 = vld [vmem:[%s10 + $0x28] sm:$0xf]
  %v1024 = vld [vmem:[%s10 + $0x2c] sm:$0xf]
  %v1025 = vld [vmem:[%s10 + $0x30] sm:$0xf]
  %v1026 = vld [vmem:[%s10 + $0x34] sm:$0xf]
  %v1027 = vld [vmem:[%s10 + $0x38] sm:$0xf]
  %v1028 = vld [vmem:[%s10 + $0x3c] sm:$0xf]
  %v1029 = vld [vmem:[%s11] sm:$0x1]
  %v1031 = vlaneseq
  %v1032 = vshrl.u32 %v1031, 7
  %v1033 = vsub.s32 0, %v1032
  %v1034 = vrot.slane %v1029, %v1033
  %v1052 = vunpack.c.l.b16 %v1013
  %v1053 = vunpack.c.l.b16 %v1014
  %v1054 = vunpack.c.l.b16 %v1015
  %v1055 = vunpack.c.l.b16 %v1016
  %v1056 = vunpack.c.l.b16 %v1017
  %v1057 = vunpack.c.l.b16 %v1018
  %v1058 = vunpack.c.l.b16 %v1019
  %v1059 = vunpack.c.l.b16 %v1020
  %v1060 = vunpack.c.l.b16 %v1021
  %v1061 = vunpack.c.l.b16 %v1022
  %v1062 = vunpack.c.l.b16 %v1023
  %v1063 = vunpack.c.l.b16 %v1024
  %v1064 = vunpack.c.l.b16 %v1025
  %v1065 = vunpack.c.l.b16 %v1026
  %v1066 = vunpack.c.l.b16 %v1027
  %v1067 = vunpack.c.l.b16 %v1028
  %v1068 = vpack.c.b16 %v1053, %v1052
  %v1069 = vpack.c.b16 %v1055, %v1054
  %v1070 = vpack.c.b16 %v1057, %v1056
  %v1071 = vpack.c.b16 %v1059, %v1058
  %v1072 = vpack.c.b16 %v1061, %v1060
  %v1073 = vpack.c.b16 %v1063, %v1062
  %v1074 = vpack.c.b16 %v1065, %v1064
  %v1075 = vpack.c.b16 %v1067, %v1066
  %1084 = vmatprep.subr.bf16.mxu0 0
  %1085 = vmatpush1.bf16.msra.mxu0 %v1068
  %1086 = vmatprep.subr.bf16.mxu0 0
  %1087 = vmatpush1.bf16.msra.mxu0 %v1069
  %1088 = vmatprep.subr.bf16.mxu0 0
  %1089 = vmatpush1.bf16.msra.mxu0 %v1070
  %1090 = vmatprep.subr.bf16.mxu0 0
  %1091 = vmatpush1.bf16.msra.mxu0 %v1071
  %1092 = vmatprep.subr.bf16.mxu0 0
  %1093 = vmatpush1.bf16.msra.mxu0 %v1072
  %1094 = vmatprep.subr.bf16.mxu0 0
  %1095 = vmatpush1.bf16.msra.mxu0 %v1073
  %1096 = vmatprep.subr.bf16.mxu0 0
  %1097 = vmatpush1.bf16.msra.mxu0 %v1074
  %1098 = vmatprep.subr.bf16.mxu0 0
  %1099 = vmatpush1.bf16.msra.mxu0 %v1075
  %1100 = vmatprep.subr.bf16.mxu0 0
  %1101 = vmatpush1.bf16.msra.mxu0 0
  %1102 = vmatprep.subr.bf16.mxu0 0
  %1103 = vmatpush1.bf16.msra.mxu0 0
  %1104 = vmatprep.subr.bf16.mxu0 0
  %1105 = vmatpush1.bf16.msra.mxu0 0
  %1106 = vmatprep.subr.bf16.mxu0 0
  %1107 = vmatpush1.bf16.msra.mxu0 0
  %1108 = vmatprep.subr.bf16.mxu0 0
  %1109 = vmatpush1.bf16.msra.mxu0 0
  %1110 = vmatprep.subr.bf16.mxu0 0
  %1111 = vmatpush1.bf16.msra.mxu0 0
  %1112 = vmatprep.subr.bf16.mxu0 0
  %1113 = vmatpush1.bf16.msra.mxu0 0
  %1114 = vmatprep.subr.bf16.mxu0 0
  %1115 = vmatpush1.bf16.msra.mxu0 0
  %1116 = vmatprep.mubr.bf16.mxu0 0
  %1117 = vmatmul.mubr.bf16.gmra.mrb[0].mxu0 %v1005
  %v1118 = vpop.f32.mrb[0].mxu0
  %v1119 = vadd.f32 %v1034, %v1118
  %v1120 = vpop.f32.mrb[0].mxu0
  %v1121 = vpop.f32.mrb[0].mxu0
  %v1122 = vadd.f32 %v1034, %v1121
  %v1123 = vpop.f32.mrb[0].mxu0
  %1124 = vmatprep.mubr.bf16.mxu0 0
  %1125 = vmatmul.mubr.bf16.gmra.mrb[0].mxu0 %v1006
  %v1126 = vpop.f32.mrb[0].mxu0
  %v1127 = vadd.f32 %v1034, %v1126
  %v1128 = vpop.f32.mrb[0].mxu0
  %v1129 = vpop.f32.mrb[0].mxu0
  %v1130 = vadd.f32 %v1034, %v1129
  %v1131 = vpop.f32.mrb[0].mxu0
  %1132 = vmatprep.mubr.bf16.mxu0 0
  %1133 = vmatmul.mubr.bf16.gmra.mrb[0].mxu0 %v1007
  %v1134 = vpop.f32.mrb[0].mxu0
  %v1135 = vadd.f32 %v1034, %v1134
  %v1136 = vpop.f32.mrb[0].mxu0
  %v1137 = vpop.f32.mrb[0].mxu0
  %v1138 = vadd.f32 %v1034, %v1137
  %v1139 = vpop.f32.mrb[0].mxu0
  %1140 = vmatprep.mubr.bf16.mxu0 0
  %1141 = vmatmul.mubr.bf16.gmra.mrb[0].mxu0 %v1008
  %v1142 = vpop.f32.mrb[0].mxu0
  %v1143 = vadd.f32 %v1034, %v1142
  %v1144 = vpop.f32.mrb[0].mxu0
  %v1145 = vpop.f32.mrb[0].mxu0
  %v1146 = vadd.f32 %v1034, %v1145
  %v1147 = vpop.f32.mrb[0].mxu0
  %1148 = vmatprep.mubr.bf16.mxu0 0
  %1149 = vmatmul.mubr.bf16.gmra.mrb[0].mxu0 %v1009
  %v1150 = vpop.f32.mrb[0].mxu0
  %v1151 = vadd.f32 %v1034, %v1150
  %v1152 = vpop.f32.mrb[0].mxu0
  %v1153 = vpop.f32.mrb[0].mxu0
  %v1154 = vadd.f32 %v1034, %v1153
  %v1155 = vpop.f32.mrb[0].mxu0
  %1156 = vmatprep.mubr.bf16.mxu0 0
  %1157 = vmatmul.mubr.bf16.gmra.mrb[0].mxu0 %v1010
  %v1158 = vpop.f32.mrb[0].mxu0
  %v1159 = vadd.f32 %v1034, %v1158
  %v1160 = vpop.f32.mrb[0].mxu0
  %v1161 = vpop.f32.mrb[0].mxu0
  %v1162 = vadd.f32 %v1034, %v1161
  %v1163 = vpop.f32.mrb[0].mxu0
  %1164 = vmatprep.mubr.bf16.mxu0 0
  %1165 = vmatmul.mubr.bf16.gmra.mrb[0].mxu0 %v1011
  %v1166 = vpop.f32.mrb[0].mxu0
  %v1167 = vadd.f32 %v1034, %v1166
  %v1168 = vpop.f32.mrb[0].mxu0
  %v1169 = vpop.f32.mrb[0].mxu0
  %v1170 = vadd.f32 %v1034, %v1169
  %v1171 = vpop.f32.mrb[0].mxu0
  %1172 = vmatprep.mubr.bf16.mxu0 0
  %1173 = vmatmul.mubr.bf16.gmra.mrb[0].mxu0 %v1012
  %v1174 = vpop.f32.mrb[0].mxu0
  %v1175 = vadd.f32 %v1034, %v1174
  %v1176 = vpop.f32.mrb[0].mxu0
  %v1177 = vpop.f32.mrb[0].mxu0
  %v1178 = vadd.f32 %v1034, %v1177
  %v1179 = vpop.f32.mrb[0].mxu0
  %1180 = vdwg.mxu0
  %v1181 = vld [vmem:[%s2] sm:$0xff]
  %v1182 = vld [vmem:[%s2 + $0x8] sm:$0xff]
  %v1183 = vld [vmem:[%s2 + $0x10] sm:$0xff]
  %v1184 = vld [vmem:[%s2 + $0x18] sm:$0xff]
  %v1185 = vld [vmem:[%s2 + $0x20] sm:$0xff]
  %v1186 = vld [vmem:[%s2 + $0x28] sm:$0xff]
  %v1187 = vld [vmem:[%s2 + $0x30] sm:$0xff]
  %v1188 = vld [vmem:[%s2 + $0x38] sm:$0xff]
  %v1189 = vld [vmem:[%s2 + $0x40] sm:$0xff]
  %v1190 = vld [vmem:[%s2 + $0x48] sm:$0xff]
  %v1191 = vld [vmem:[%s2 + $0x50] sm:$0xff]
  %v1192 = vld [vmem:[%s2 + $0x58] sm:$0xff]
  %v1193 = vld [vmem:[%s2 + $0x60] sm:$0xff]
  %v1194 = vld [vmem:[%s2 + $0x68] sm:$0xff]
  %v1195 = vld [vmem:[%s2 + $0x70] sm:$0xff]
  %v1196 = vld [vmem:[%s2 + $0x78] sm:$0xff]
  %v1197 = vsub.f32 %v1119, %v1181
  %v1198 = vsub.f32 %v1122, %v1182
  %v1199 = vsub.f32 %v1127, %v1183
  %v1200 = vsub.f32 %v1130, %v1184
  %v1201 = vsub.f32 %v1135, %v1185
  %v1202 = vsub.f32 %v1138, %v1186
  %v1203 = vsub.f32 %v1143, %v1187
  %v1204 = vsub.f32 %v1146, %v1188
  %v1205 = vsub.f32 %v1151, %v1189
  %v1206 = vsub.f32 %v1154, %v1190
  %v1207 = vsub.f32 %v1159, %v1191
  %v1208 = vsub.f32 %v1162, %v1192
  %v1209 = vsub.f32 %v1167, %v1193
  %v1210 = vsub.f32 %v1170, %v1194
  %v1211 = vsub.f32 %v1175, %v1195
  %v1212 = vsub.f32 %v1178, %v1196
  %v1213 = vand.u32 2147483647, %v1197
  %v1214 = vand.u32 2147483647, %v1198
  %v1215 = vand.u32 2147483647, %v1199
  %v1216 = vand.u32 2147483647, %v1200
  %v1217 = vand.u32 2147483647, %v1201
  %v1218 = vand.u32 2147483647, %v1202
  %v1219 = vand.u32 2147483647, %v1203
  %v1220 = vand.u32 2147483647, %v1204
  %v1221 = vand.u32 2147483647, %v1205
  %v1222 = vand.u32 2147483647, %v1206
  %v1223 = vand.u32 2147483647, %v1207
  %v1224 = vand.u32 2147483647, %v1208
  %v1225 = vand.u32 2147483647, %v1209
  %v1226 = vand.u32 2147483647, %v1210
  %v1227 = vand.u32 2147483647, %v1211
  %v1228 = vand.u32 2147483647, %v1212
  %s1229 = smul.u32 0, 128
  %v1230 = vlaneseq
  %v1231 = vshrl.u32 %v1230, 7
  %v1232 = vadd.s32 %v1231, 8
  %v1233 = vadd.s32 %v1231, 16
  %v1234 = vadd.s32 %v1231, 24
  %v1235 = vadd.s32 %v1231, 32
  %v1236 = vadd.s32 %v1231, 40
  %v1237 = vadd.s32 %v1231, 48
  %v1238 = vadd.s32 %v1231, 56
  %v1239 = vadd.s32 %v1231, 64
  %v1240 = vadd.s32 %v1231, 72
  %v1241 = vadd.s32 %v1231, 80
  %v1242 = vadd.s32 %v1231, 88
  %v1243 = vadd.s32 %v1231, 96
  %v1244 = vadd.s32 %v1231, 104
  %v1245 = vadd.s32 %v1231, 112
  %v1246 = vadd.s32 %v1231, 120
  %v1247 = vstv %s1229
  %v1248 = vadd.s32 %v1247, %v1231
  %v1249 = vadd.s32 %v1247, %v1232
  %v1250 = vadd.s32 %v1247, %v1233
  %v1251 = vadd.s32 %v1247, %v1234
  %v1252 = vadd.s32 %v1247, %v1235
  %v1253 = vadd.s32 %v1247, %v1236
  %v1254 = vadd.s32 %v1247, %v1237
  %v1255 = vadd.s32 %v1247, %v1238
  %v1256 = vadd.s32 %v1247, %v1239
  %v1257 = vadd.s32 %v1247, %v1240
  %v1258 = vadd.s32 %v1247, %v1241
  %v1259 = vadd.s32 %v1247, %v1242
  %v1260 = vadd.s32 %v1247, %v1243
  %v1261 = vadd.s32 %v1247, %v1244
  %v1262 = vadd.s32 %v1247, %v1245
  %v1263 = vadd.s32 %v1247, %v1246
  %vm1264 = vcmp.lt.s32.totalorder %v1248, 16
  %vm1265 = vcmp.lt.s32.totalorder %v1249, 16
  %vm1266 = vcmp.lt.s32.totalorder %v1250, 16
  %vm1267 = vcmp.lt.s32.totalorder %v1251, 16
  %vm1268 = vcmp.lt.s32.totalorder %v1252, 16
  %vm1269 = vcmp.lt.s32.totalorder %v1253, 16
  %vm1270 = vcmp.lt.s32.totalorder %v1254, 16
  %vm1271 = vcmp.lt.s32.totalorder %v1255, 16
  %vm1272 = vcmp.lt.s32.totalorder %v1256, 16
  %vm1273 = vcmp.lt.s32.totalorder %v1257, 16
  %vm1274 = vcmp.lt.s32.totalorder %v1258, 16
  %vm1275 = vcmp.lt.s32.totalorder %v1259, 16
  %vm1276 = vcmp.lt.s32.totalorder %v1260, 16
  %vm1277 = vcmp.lt.s32.totalorder %v1261, 16
  %vm1278 = vcmp.lt.s32.totalorder %v1262, 16
  %vm1279 = vcmp.lt.s32.totalorder %v1263, 16
  %v1280 = vsel %vm1264, 1, 0
  %v1281 = vsel %vm1265, 1, 0
  %v1282 = vsel %vm1266, 1, 0
  %v1283 = vsel %vm1267, 1, 0
  %v1284 = vsel %vm1268, 1, 0
  %v1285 = vsel %vm1269, 1, 0
  %v1286 = vsel %vm1270, 1, 0
  %v1287 = vsel %vm1271, 1, 0
  %v1288 = vsel %vm1272, 1, 0
  %v1289 = vsel %vm1273, 1, 0
  %v1290 = vsel %vm1274, 1, 0
  %v1291 = vsel %vm1275, 1, 0
  %v1292 = vsel %vm1276, 1, 0
  %v1293 = vsel %vm1277, 1, 0
  %v1294 = vsel %vm1278, 1, 0
  %v1295 = vsel %vm1279, 1, 0
  %vm1296 = vcmp.eq.s32.totalorder %v1280, 1
  %vm1297 = vcmp.eq.s32.totalorder %v1281, 1
  %vm1298 = vcmp.eq.s32.totalorder %v1282, 1
  %vm1299 = vcmp.eq.s32.totalorder %v1283, 1
  %vm1300 = vcmp.eq.s32.totalorder %v1284, 1
  %vm1301 = vcmp.eq.s32.totalorder %v1285, 1
  %vm1302 = vcmp.eq.s32.totalorder %v1286, 1
  %vm1303 = vcmp.eq.s32.totalorder %v1287, 1
  %vm1304 = vcmp.eq.s32.totalorder %v1288, 1
  %vm1305 = vcmp.eq.s32.totalorder %v1289, 1
  %vm1306 = vcmp.eq.s32.totalorder %v1290, 1
  %vm1307 = vcmp.eq.s32.totalorder %v1291, 1
  %vm1308 = vcmp.eq.s32.totalorder %v1292, 1
  %vm1309 = vcmp.eq.s32.totalorder %v1293, 1
  %vm1310 = vcmp.eq.s32.totalorder %v1294, 1
  %vm1311 = vcmp.eq.s32.totalorder %v1295, 1
  %v1312 = vsel %vm1296, %v1213, 0.0
  %v1313 = vsel %vm1297, %v1214, 0.0
  %v1314 = vsel %vm1298, %v1215, 0.0
  %v1315 = vsel %vm1299, %v1216, 0.0
  %v1316 = vsel %vm1300, %v1217, 0.0
  %v1317 = vsel %vm1301, %v1218, 0.0
  %v1318 = vsel %vm1302, %v1219, 0.0
  %v1319 = vsel %vm1303, %v1220, 0.0
  %v1320 = vsel %vm1304, %v1221, 0.0
  %v1321 = vsel %vm1305, %v1222, 0.0
  %v1322 = vsel %vm1306, %v1223, 0.0
  %v1323 = vsel %vm1307, %v1224, 0.0
  %v1324 = vsel %vm1308, %v1225, 0.0
  %v1325 = vsel %vm1309, %v1226, 0.0
  %v1326 = vsel %vm1310, %v1227, 0.0
  %v1327 = vsel %vm1311, %v1228, 0.0
  %v1328 = vadd.f32 %v1312, %v1313
  %v1329 = vadd.f32 %v1328, %v1314
  %v1330 = vadd.f32 %v1329, %v1315
  %v1331 = vadd.f32 %v1330, %v1316
  %v1332 = vadd.f32 %v1331, %v1317
  %v1333 = vadd.f32 %v1332, %v1318
  %v1334 = vadd.f32 %v1333, %v1319
  %v1335 = vadd.f32 %v1334, %v1320
  %v1336 = vadd.f32 %v1335, %v1321
  %v1337 = vadd.f32 %v1336, %v1322
  %v1338 = vadd.f32 %v1337, %v1323
  %v1339 = vadd.f32 %v1338, %v1324
  %v1340 = vadd.f32 %v1339, %v1325
  %v1341 = vadd.f32 %v1340, %v1326
  %v1342 = vadd.f32 %v1341, %v1327
  %v1343 = vrot.slane %v1342, 4
  %v1344 = vadd.f32 %v1342, %v1343
  %v1345 = vrot.slane %v1344, 2
  %v1346 = vadd.f32 %v1344, %v1345
  %v1347 = vrot.slane %v1346, 1
  %v1348 = vadd.f32 %v1346, %v1347
  %1349 = vst [vmem:[%s12] sm:$0xff] %v1348
  // Predicated region
  $region50: #{base_model_forward.3} parent=0 // pred_check
    _
  $region51: #{base_model_forward.3} parent=0 // pred_check_branch
    %1351 = sbr.rel (0) target = $region53
  $region52: #{base_model_forward.3} parent=0 // pred_region
    _
  $region53: #{base_model_forward.3} parent=0 // pred_fallthru
    _
  // Predicated region
  $region54: #{base_model_forward.3} parent=0 // pred_check
    _
  $region55: #{base_model_forward.3} parent=0 // pred_check_branch
    %1353 = sbr.rel (0) target = $region57
  $region56: #{base_model_forward.3} parent=0 // pred_region
    _
  $region57: #{base_model_forward.3} parent=0 // pred_fallthru
    _

</llo_original>
